<compile_context>
chip_gen: v7x
topology: tpu7x:2x2x1
jax: 0.10.0
libtpu: 0.0.40
codegen_flags: <defaults>
</compile_context>

<pallas_src>
import functools

import numpy as np
import jax
import jax.numpy as jnp
from jax import lax
from jax.experimental import pallas as pl
from jax.experimental.pallas import tpu as pltpu


HEAD_PAD = 128    # lane-dense head output width (cls/box padded to 128 columns)
HEAD_H_OFF = 64   # column offset of the box-MLP hidden block inside the packed head slab


def _align8(n):
    return ((n + 7) // 8) * 8


def _row_layout(entries):
    """entries: list of (name, nrows). Each entry starts at an 8-aligned row."""
    off, cur = {}, 0
    for name, n in entries:
        off[name] = cur
        cur = _align8(cur + n)
    return off, cur


# -----------------------------------------------------------------------------
# Single fused Pallas kernel: one grid step == one batch element.
# -----------------------------------------------------------------------------
def _fused_forward_kernel(zp_ref, xp_ref, ew_ref, hw_ref, cls_ref, box_ref, *,
                          nz, nx, d, dz, dx, kz, kx, scale, off, use_proj):
    f32 = jnp.float32
    zp = zp_ref[...].astype(f32)                       # (nz, kz) template patches
    xp = xp_ref[...].astype(f32)                       # (nx, kx) search patches

    # ---- backbone patch-embed (+ optional input projection), stays in VMEM ----
    zh = (jnp.dot(zp, ew_ref[off["wz1"]:off["wz1"] + kz, 0:dz],
                  preferred_element_type=f32)
          + ew_ref[off["bz1"]:off["bz1"] + 1, 0:dz])                     # (nz, dz)
    xh = (jnp.dot(xp, ew_ref[off["wx1"]:off["wx1"] + kx, 0:dx],
                  preferred_element_type=f32)
          + ew_ref[off["bx1"]:off["bx1"] + 1, 0:dx])                     # (nx, dx)
    if use_proj:
        zf = (jnp.dot(zh, ew_ref[off["wz2"]:off["wz2"] + dz, 0:d],
                      preferred_element_type=f32)
              + ew_ref[off["bz2"]:off["bz2"] + 1, 0:d])                  # (nz, d)
        xf = (jnp.dot(xh, ew_ref[off["wx2"]:off["wx2"] + dx, 0:d],
                      preferred_element_type=f32)
              + ew_ref[off["bx2"]:off["bx2"] + 1, 0:d])                  # (nx, d)
    else:
        zf, xf = zh, xh

    # ---- cross-attention stand-in: PE add, scaled scores, softmax, residual ----
    q = xf + ew_ref[off["spe"]:off["spe"] + nx, 0:d]
    k = (zf + ew_ref[off["tpe"]:off["tpe"] + nz, 0:d]) * scale   # fold 1/sqrt(d) into k
    # contract last dims directly (no explicit k.T / XLU transpose)
    s = lax.dot_general(q, k, (((1,), (1,)), ((), ())),
                        preferred_element_type=f32)               # (nx, nz)
    m = jnp.max(s, axis=-1, keepdims=True)
    p = jnp.exp(s - m)
    attn = p * pl.reciprocal(jnp.sum(p, axis=-1, keepdims=True), approx=True)
    feat = xf + jnp.dot(attn, zf, preferred_element_type=f32)     # (nx, d)

    # ---- heads: cls weight + box-MLP layer-1 packed into one (d, 128) matmul ----
    comb = (jnp.dot(feat, hw_ref[off["WA"]:off["WA"] + d, :],
                    preferred_element_type=f32)
            + hw_ref[off["BA"]:off["BA"] + 1, :])                 # (nx, 128)
    # cls logits are cols 0:2; cols HEAD_H_OFF:HEAD_H_OFF+d hold the pre-relu
    # box hidden (harmless, sliced away by the wrapper).  Lane-dense store.
    cls_ref[...] = comb.astype(cls_ref.dtype)

    r = jnp.maximum(comb, 0.0)
    box = jax.nn.sigmoid(
        jnp.dot(r, hw_ref[off["WB"]:off["WB"] + HEAD_PAD, :],
                preferred_element_type=f32)
        + hw_ref[off["BB"]:off["BB"] + 1, :])                     # (nx, 128)
    box_ref[...] = box.astype(box_ref.dtype)


def pallas_transt_forward(z_patches, x_patches, emb_w, head_w, *,
                          batch, nz, nx, d, dz, dx, kz, kx, off, use_proj):
    """Single launch for the whole forward pass (grid over batch)."""
    kern = functools.partial(
        _fused_forward_kernel,
        nz=nz, nx=nx, d=d, dz=dz, dx=dx, kz=kz, kx=kx,
        scale=1.0 / float(np.sqrt(d)), off=off, use_proj=use_proj)
    M = batch * nx
    return pl.pallas_call(
        kern,
        out_shape=(jax.ShapeDtypeStruct((M, HEAD_PAD), x_patches.dtype),
                   jax.ShapeDtypeStruct((M, HEAD_PAD), x_patches.dtype)),
        grid=(batch,),
        in_specs=[
            pl.BlockSpec((nz, kz), lambda b: (b, 0)),          # template patches (per batch)
            pl.BlockSpec((nx, kx), lambda b: (b, 0)),          # search patches (per batch)
            pl.BlockSpec(emb_w.shape, lambda b: (0, 0)),       # packed embed/PE slab
            pl.BlockSpec(head_w.shape, lambda b: (0, 0)),      # packed head slab
        ],
        out_specs=(pl.BlockSpec((nx, HEAD_PAD), lambda b: (b, 0)),
                   pl.BlockSpec((nx, HEAD_PAD), lambda b: (b, 0))),
        compiler_params=pltpu.CompilerParams(
            dimension_semantics=("parallel",)),                # batch shards across TCs on v7x
    )(z_patches, x_patches, emb_w, head_w)


# -----------------------------------------------------------------------------
# Position encoding buffer (standard DETR-style 2D sine PE; built once, not hot)
# -----------------------------------------------------------------------------
def generate_2d_sine_position_encoding(b, h, w, dim, temperature=10000.0):
    num_pos_feats = dim // 2
    y = jnp.arange(1, h + 1, dtype=jnp.float32)[:, None] * jnp.ones((1, w), jnp.float32)
    x = jnp.arange(1, w + 1, dtype=jnp.float32)[None, :] * jnp.ones((h, 1), jnp.float32)
    eps = 1e-6
    scale = 2.0 * np.pi
    y = y / (h + eps) * scale
    x = x / (w + eps) * scale
    dim_t = jnp.arange(num_pos_feats, dtype=jnp.float32)
    dim_t = temperature ** (2.0 * jnp.floor(dim_t / 2.0) / num_pos_feats)
    pos_x = x[:, :, None] / dim_t
    pos_y = y[:, :, None] / dim_t
    pos_x = jnp.stack(
        [jnp.sin(pos_x[:, :, 0::2]), jnp.cos(pos_x[:, :, 1::2])], axis=3
    ).reshape(h, w, -1)
    pos_y = jnp.stack(
        [jnp.sin(pos_y[:, :, 0::2]), jnp.cos(pos_y[:, :, 1::2])], axis=3
    ).reshape(h, w, -1)
    pos = jnp.concatenate([pos_y, pos_x], axis=2)            # (h, w, dim)
    return jnp.broadcast_to(pos[None], (b, h, w, dim))


# -----------------------------------------------------------------------------
# Parameter construction.  Returns (params, config):
# params holds ONLY arrays (jit-safe pytree), config holds static metadata.
# -----------------------------------------------------------------------------
def _xavier_uniform(key, fan_in, fan_out):
    a = float(np.sqrt(6.0 / (fan_in + fan_out)))
    return jax.random.uniform(key, (fan_in, fan_out), jnp.float32, -a, a)


def build_params(
    *,
    in_channels=3,
    transformer_hidden_dim=32,
    template_output_stage="stage2",
    search_output_stage="stage3",
    template_output_dim=24,
    search_output_dim=48,
    template_output_shape=(4, 4),     # (W, H)
    search_output_shape=(8, 8),       # (W, H)
    enable_input_projection=True,
    seed=0,
):
    keys = jax.random.split(jax.random.PRNGKey(seed), 8)

    D = transformer_hidden_dim
    Dz, Dx = template_output_dim, search_output_dim
    assert D <= HEAD_H_OFF, "packed head layout requires hidden_dim <= 64"

    backbone_patch = {"stage2": 4, "stage3": 8}
    pz = backbone_patch[template_output_stage]
    px = backbone_patch[search_output_stage]
    Kz = in_channels * pz * pz
    Kx = in_channels * px * px
    Nz = template_output_shape[0] * template_output_shape[1]
    Nx = search_output_shape[0] * search_output_shape[1]

    # backbone stand-in: per-stage patch embedding (conv kernel = stride = P)
    wz1 = _xavier_uniform(keys[0], Kz, Dz)
    bz1 = jnp.zeros((1, Dz), jnp.float32)
    wx1 = _xavier_uniform(keys[1], Kx, Dx)
    bx1 = jnp.zeros((1, Dx), jnp.float32)

    if enable_input_projection:
        wz2 = _xavier_uniform(keys[2], Dz, D)
        bz2 = jnp.zeros((1, D), jnp.float32)
        wx2 = _xavier_uniform(keys[3], Dx, D)
        bx2 = jnp.zeros((1, D), jnp.float32)
    else:
        assert D == Dz == Dx
        wz2 = bz2 = wx2 = bx2 = None

    # position-encoding buffers (torch buffer view(1, H*W, dim), squeezed)
    tpe = generate_2d_sine_position_encoding(
        1, template_output_shape[1], template_output_shape[0], D
    ).reshape(Nz, D)
    spe = generate_2d_sine_position_encoding(
        1, search_output_shape[1], search_output_shape[0], D
    ).reshape(Nx, D)

    # head stand-in (cls: D->2, box MLP: D->D->4)
    wc = _xavier_uniform(keys[4], D, 2)
    bc = jnp.zeros((1, 2), jnp.float32)
    w1 = _xavier_uniform(keys[5], D, D)
    b1 = jnp.zeros((1, D), jnp.float32)
    w2 = _xavier_uniform(keys[6], D, 4)
    b2 = jnp.zeros((1, 4), jnp.float32)

    # ---- pack everything into two slabs (few DMA descriptors in the kernel) ----
    emb_entries = [("wx1", Kx), ("wz1", Kz)]
    if enable_input_projection:
        emb_entries += [("wx2", Dx), ("wz2", Dz)]
    emb_entries += [("bx1", 1), ("bz1", 1)]
    if enable_input_projection:
        emb_entries += [("bx2", 1), ("bz2", 1)]
    emb_entries += [("spe", Nx), ("tpe", Nz)]
    emb_off, emb_rows = _row_layout(emb_entries)

    we = max(Dz, Dx, D)
    emb_w = jnp.zeros((emb_rows, we), jnp.float32)
    emb_w = emb_w.at[emb_off["wx1"]:emb_off["wx1"] + Kx, :Dx].set(wx1)
    emb_w = emb_w.at[emb_off["wz1"]:emb_off["wz1"] + Kz, :Dz].set(wz1)
    emb_w = emb_w.at[emb_off["bx1"]:emb_off["bx1"] + 1, :Dx].set(bx1)
    emb_w = emb_w.at[emb_off["bz1"]:emb_off["bz1"] + 1, :Dz].set(bz1)
    if enable_input_projection:
        emb_w = emb_w.at[emb_off["wx2"]:emb_off["wx2"] + Dx, :D].set(wx2)
        emb_w = emb_w.at[emb_off["wz2"]:emb_off["wz2"] + Dz, :D].set(wz2)
        emb_w = emb_w.at[emb_off["bx2"]:emb_off["bx2"] + 1, :D].set(bx2)
        emb_w = emb_w.at[emb_off["bz2"]:emb_off["bz2"] + 1, :D].set(bz2)
    emb_w = emb_w.at[emb_off["spe"]:emb_off["spe"] + Nx, :D].set(spe)
    emb_w = emb_w.at[emb_off["tpe"]:emb_off["tpe"] + Nz, :D].set(tpe)

    head_off, head_rows = _row_layout(
        [("WA", D), ("WB", HEAD_PAD), ("BA", 1), ("BB", 1)])
    head_w = jnp.zeros((head_rows, HEAD_PAD), jnp.float32)
    # W_A: cls weight in cols 0:2, box-MLP layer-1 weight in cols HEAD_H_OFF:+D
    head_w = head_w.at[head_off["WA"]:head_off["WA"] + D, 0:2].set(wc)
    head_w = head_w.at[head_off["WA"]:head_off["WA"] + D,
                       HEAD_H_OFF:HEAD_H_OFF + D].set(w1)
    # W_B: box-MLP layer-2 weight picks up relu(hidden) from cols HEAD_H_OFF:+D
    head_w = head_w.at[head_off["WB"] + HEAD_H_OFF:head_off["WB"] + HEAD_H_OFF + D,
                       0:4].set(w2)
    head_w = head_w.at[head_off["BA"]:head_off["BA"] + 1, 0:2].set(bc)
    head_w = head_w.at[head_off["BA"]:head_off["BA"] + 1,
                       HEAD_H_OFF:HEAD_H_OFF + D].set(b1)
    head_w = head_w.at[head_off["BB"]:head_off["BB"] + 1, 0:4].set(b2)

    params = {"emb_w": emb_w, "head_w": head_w}
    config = {
        "template_output_stage": template_output_stage,
        "search_output_stage": search_output_stage,
        "backbone_patch": backbone_patch,
        "enable_input_projection": enable_input_projection,
        "off": {**emb_off, **head_off},
        "d": D, "dz": Dz, "dx": Dx, "kz": Kz, "kx": Kx, "nz": Nz, "nx": Nx,
        "num_cls": 2, "num_box": 4,
    }
    return params, config


# -----------------------------------------------------------------------------
# Forward pass (mirrors TransTVariantBackboneDifferentOutputStageNetwork.forward)
# -----------------------------------------------------------------------------
def _extract_patches(x_nchw, P):
    """NCHW -> (B * n_tokens, C*P*P) im2col for the patch-embed backbone stage."""
    # TODO(synk): im2col stays as a cheap XLA-side reshape/transpose (~100 KB);
    # could be folded into the kernel via strided ref reads if sizes grow.
    B, C, H, W = x_nchw.shape
    p = x_nchw.reshape(B, C, H // P, P, W // P, P)
    p = p.transpose(0, 2, 4, 1, 3, 5).reshape(B * (H // P) * (W // P), C * P * P)
    return p, (H // P) * (W // P)


def transt_variant_forward(config, params, z, x):
    t_stage = config["template_output_stage"]
    s_stage = config["search_output_stage"]
    pz = config["backbone_patch"][t_stage]
    px = config["backbone_patch"][s_stage]
    B = z.shape[0]

    z_patches, nz = _extract_patches(z, pz)
    x_patches, nx = _extract_patches(x, px)
    assert nz == config["nz"] and nx == config["nx"], "input spatial size mismatch"

    cls_pad, box_pad = pallas_transt_forward(
        z_patches, x_patches, params["emb_w"], params["head_w"],
        batch=B, nz=nz, nx=nx,
        d=config["d"], dz=config["dz"], dx=config["dx"],
        kz=config["kz"], kx=config["kx"],
        off=config["off"], use_proj=config["enable_input_projection"])

    logits = cls_pad[:, :config["num_cls"]].reshape(B, nx, config["num_cls"])
    boxes = box_pad[:, :config["num_box"]].reshape(B, nx, config["num_box"])
    return logits, boxes


# -----------------------------------------------------------------------------
if __name__ == "__main__":
    B = 2
    params, config = build_params()

    kz, kx = jax.random.split(jax.random.PRNGKey(0))
    # template crop (stage2, patch 4 -> 4x4 tokens), search crop (stage3, patch 8 -> 8x8 tokens)
    z = jax.random.normal(kz, (B, 3, 16, 16), dtype=jnp.float32)   # NCHW
    x = jax.random.normal(kx, (B, 3, 64, 64), dtype=jnp.float32)   # NCHW

    fwd = jax.jit(functools.partial(transt_variant_forward, config))
    logits, boxes = fwd(params, z, x)
    jax.block_until_ready((logits, boxes))

    assert logits.shape == (B, 64, 2)
    assert boxes.shape == (B, 64, 4)
    assert bool(jnp.all(jnp.isfinite(logits))) and bool(jnp.all(jnp.isfinite(boxes)))
    assert bool(jnp.all((boxes >= 0.0) & (boxes <= 1.0)))
    # TODO(synk): backbone / transformer / head are injected modules in the
    # reference code; deterministic stand-ins are used here (see header comment).
    print("KERNEL_OK")
</pallas_src>

<mosaic_0001>
module attributes {stable_mosaic.version = 11 : i64} {
  func.func @_fused_forward_kernel(%arg0: i32, %arg1: memref<16x48xf32, #tpu.memory_space<vmem>>, %arg2: memref<64x192xf32, #tpu.memory_space<vmem>>, %arg3: memref<424x48xf32, #tpu.memory_space<vmem>>, %arg4: memref<176x128xf32, #tpu.memory_space<vmem>>, %arg5: memref<64x128xf32, #tpu.memory_space<vmem>>, %arg6: memref<64x128xf32, #tpu.memory_space<vmem>>) attributes {dimension_semantics = [#tpu.dimension_semantics<parallel>], iteration_bounds = array<i64: 2>, scalar_prefetch = 0 : i64, scratch_operands = 0 : i64, tpu.core_type = #tpu.core_type<tc>, window_params = [{transform_indices = @transform_0, window_bounds = array<i64: 16, 48>}, {transform_indices = @transform_1, window_bounds = array<i64: 64, 192>}, {pipeline_mode = #tpu.pipeline_mode<synchronous>, transform_indices = @transform_2, window_bounds = array<i64: 424, 48>}, {pipeline_mode = #tpu.pipeline_mode<synchronous>, transform_indices = @transform_3, window_bounds = array<i64: 176, 128>}, {transform_indices = @transform_4, window_bounds = array<i64: 64, 128>}, {transform_indices = @transform_5, window_bounds = array<i64: 64, 128>}]} {
    %c0 = arith.constant 0 : index
    %c0_0 = arith.constant 0 : index
    %0 = vector.load %arg1[%c0, %c0_0] : memref<16x48xf32, #tpu.memory_space<vmem>>, vector<16x48xf32>
    %c0_1 = arith.constant 0 : index
    %c0_2 = arith.constant 0 : index
    %1 = vector.load %arg2[%c0_1, %c0_2] : memref<64x192xf32, #tpu.memory_space<vmem>>, vector<64x192xf32>
    %c192 = arith.constant 192 : index
    %c0_3 = arith.constant 0 : index
    %2 = vector.load %arg3[%c192, %c0_3] : memref<424x48xf32, #tpu.memory_space<vmem>>, vector<48x24xf32>
    %cst = arith.constant dense<0.000000e+00> : vector<16x24xf32>
    %3 = tpu.matmul %0, %2, %cst {dimension_numbers = #tpu.dot_dimension_numbers<[1], [0], [0], [1], [0, 0, 1, 1], [], []>} : vector<16x48xf32>, vector<48x24xf32>, vector<16x24xf32> -> vector<16x24xf32>
    %c320 = arith.constant 320 : index
    %c0_4 = arith.constant 0 : index
    %4 = vector.load %arg3[%c320, %c0_4] : memref<424x48xf32, #tpu.memory_space<vmem>>, vector<1x24xf32>
    %5 = vector.broadcast %4 : vector<1x24xf32> to vector<16x24xf32>
    %6 = arith.addf %3, %5 : vector<16x24xf32>
    %c0_5 = arith.constant 0 : index
    %c0_6 = arith.constant 0 : index
    %7 = vector.load %arg3[%c0_5, %c0_6] : memref<424x48xf32, #tpu.memory_space<vmem>>, vector<192x48xf32>
    %cst_7 = arith.constant dense<0.000000e+00> : vector<64x48xf32>
    %8 = tpu.matmul %1, %7, %cst_7 {dimension_numbers = #tpu.dot_dimension_numbers<[1], [0], [0], [1], [0, 0, 1, 1], [], []>} : vector<64x192xf32>, vector<192x48xf32>, vector<64x48xf32> -> vector<64x48xf32>
    %c312 = arith.constant 312 : index
    %c0_8 = arith.constant 0 : index
    %9 = vector.load %arg3[%c312, %c0_8] : memref<424x48xf32, #tpu.memory_space<vmem>>, vector<1x48xf32>
    %10 = vector.broadcast %9 : vector<1x48xf32> to vector<64x48xf32>
    %11 = arith.addf %8, %10 : vector<64x48xf32>
    %c288 = arith.constant 288 : index
    %c0_9 = arith.constant 0 : index
    %12 = vector.load %arg3[%c288, %c0_9] : memref<424x48xf32, #tpu.memory_space<vmem>>, vector<24x32xf32>
    %cst_10 = arith.constant dense<0.000000e+00> : vector<16x32xf32>
    %13 = tpu.matmul %6, %12, %cst_10 {dimension_numbers = #tpu.dot_dimension_numbers<[1], [0], [0], [1], [0, 0, 1, 1], [], []>} : vector<16x24xf32>, vector<24x32xf32>, vector<16x32xf32> -> vector<16x32xf32>
    %c336 = arith.constant 336 : index
    %c0_11 = arith.constant 0 : index
    %14 = vector.load %arg3[%c336, %c0_11] : memref<424x48xf32, #tpu.memory_space<vmem>>, vector<1x32xf32>
    %15 = vector.broadcast %14 : vector<1x32xf32> to vector<16x32xf32>
    %16 = arith.addf %13, %15 : vector<16x32xf32>
    %c240 = arith.constant 240 : index
    %c0_12 = arith.constant 0 : index
    %17 = vector.load %arg3[%c240, %c0_12] : memref<424x48xf32, #tpu.memory_space<vmem>>, vector<48x32xf32>
    %cst_13 = arith.constant dense<0.000000e+00> : vector<64x32xf32>
    %18 = tpu.matmul %11, %17, %cst_13 {dimension_numbers = #tpu.dot_dimension_numbers<[1], [0], [0], [1], [0, 0, 1, 1], [], []>} : vector<64x48xf32>, vector<48x32xf32>, vector<64x32xf32> -> vector<64x32xf32>
    %c328 = arith.constant 328 : index
    %c0_14 = arith.constant 0 : index
    %19 = vector.load %arg3[%c328, %c0_14] : memref<424x48xf32, #tpu.memory_space<vmem>>, vector<1x32xf32>
    %20 = vector.broadcast %19 : vector<1x32xf32> to vector<64x32xf32>
    %21 = arith.addf %18, %20 : vector<64x32xf32>
    %c344 = arith.constant 344 : index
    %c0_15 = arith.constant 0 : index
    %22 = vector.load %arg3[%c344, %c0_15] : memref<424x48xf32, #tpu.memory_space<vmem>>, vector<64x32xf32>
    %23 = arith.addf %21, %22 : vector<64x32xf32>
    %c408 = arith.constant 408 : index
    %c0_16 = arith.constant 0 : index
    %24 = vector.load %arg3[%c408, %c0_16] : memref<424x48xf32, #tpu.memory_space<vmem>>, vector<16x32xf32>
    %25 = arith.addf %16, %24 : vector<16x32xf32>
    %cst_17 = arith.constant 0.176776692 : f32
    %26 = vector.broadcast %cst_17 : f32 to vector<16x32xf32>
    %27 = arith.mulf %25, %26 : vector<16x32xf32>
    %cst_18 = arith.constant dense<0.000000e+00> : vector<64x16xf32>
    %28 = tpu.matmul %23, %27, %cst_18 {dimension_numbers = #tpu.dot_dimension_numbers<[1], [1], [0], [0], [0, 0, 1, 0], [], []>} : vector<64x32xf32>, vector<16x32xf32>, vector<64x16xf32> -> vector<64x16xf32>
    %cst_19 = arith.constant dense<0xFF800000> : vector<64xf32>
    %29 = vector.multi_reduction <maximumf>, %28, %cst_19 [1] : vector<64x16xf32> to vector<64xf32>
    %30 = vector.shape_cast %29 : vector<64xf32> to vector<64x1xf32>
    %31 = vector.broadcast %30 : vector<64x1xf32> to vector<64x16xf32>
    %32 = arith.subf %28, %31 : vector<64x16xf32>
    %33 = math.exp %32 : vector<64x16xf32>
    %cst_20 = arith.constant dense<0.000000e+00> : vector<64xf32>
    %34 = vector.multi_reduction <add>, %33, %cst_20 [1] : vector<64x16xf32> to vector<64xf32>
    %35 = vector.shape_cast %34 : vector<64xf32> to vector<64x1xf32>
    %36 = tpu.reciprocal %35 {approx = true} : vector<64x1xf32> -> vector<64x1xf32>
    %37 = vector.broadcast %36 : vector<64x1xf32> to vector<64x16xf32>
    %38 = arith.mulf %33, %37 : vector<64x16xf32>
    %cst_21 = arith.constant dense<0.000000e+00> : vector<64x32xf32>
    %39 = tpu.matmul %38, %16, %cst_21 {dimension_numbers = #tpu.dot_dimension_numbers<[1], [0], [0], [1], [0, 0, 1, 1], [], []>} : vector<64x16xf32>, vector<16x32xf32>, vector<64x32xf32> -> vector<64x32xf32>
    %40 = arith.addf %21, %39 : vector<64x32xf32>
    %c0_22 = arith.constant 0 : index
    %c0_23 = arith.constant 0 : index
    %41 = vector.load %arg4[%c0_22, %c0_23] : memref<176x128xf32, #tpu.memory_space<vmem>>, vector<32x128xf32>
    %cst_24 = arith.constant dense<0.000000e+00> : vector<64x128xf32>
    %42 = tpu.matmul %40, %41, %cst_24 {dimension_numbers = #tpu.dot_dimension_numbers<[1], [0], [0], [1], [0, 0, 1, 1], [], []>} : vector<64x32xf32>, vector<32x128xf32>, vector<64x128xf32> -> vector<64x128xf32>
    %c160 = arith.constant 160 : index
    %c0_25 = arith.constant 0 : index
    %43 = vector.load %arg4[%c160, %c0_25] : memref<176x128xf32, #tpu.memory_space<vmem>>, vector<1x128xf32>
    %44 = vector.broadcast %43 : vector<1x128xf32> to vector<64x128xf32>
    %45 = arith.addf %42, %44 : vector<64x128xf32>
    %c0_26 = arith.constant 0 : index
    %c0_27 = arith.constant 0 : index
    %46 = vector.load %arg5[%c0_26, %c0_27] : memref<64x128xf32, #tpu.memory_space<vmem>>, vector<64x128xf32>
    tpu.vector_store %arg5[%c0_26, %c0_27], %45 {strides = array<i32>} : memref<64x128xf32, #tpu.memory_space<vmem>>, vector<64x128xf32>,
    %cst_28 = arith.constant 0.000000e+00 : f32
    %47 = vector.broadcast %cst_28 : f32 to vector<64x128xf32>
    %48 = arith.maximumf %45, %47 : vector<64x128xf32>
    %c32 = arith.constant 32 : index
    %c0_29 = arith.constant 0 : index
    %49 = vector.load %arg4[%c32, %c0_29] : memref<176x128xf32, #tpu.memory_space<vmem>>, vector<128x128xf32>
    %cst_30 = arith.constant dense<0.000000e+00> : vector<64x128xf32>
    %50 = tpu.matmul %48, %49, %cst_30 {dimension_numbers = #tpu.dot_dimension_numbers<[1], [0], [0], [1], [0, 0, 1, 1], [], []>} : vector<64x128xf32>, vector<128x128xf32>, vector<64x128xf32> -> vector<64x128xf32>
    %c168 = arith.constant 168 : index
    %c0_31 = arith.constant 0 : index
    %51 = vector.load %arg4[%c168, %c0_31] : memref<176x128xf32, #tpu.memory_space<vmem>>, vector<1x128xf32>
    %52 = vector.broadcast %51 : vector<1x128xf32> to vector<64x128xf32>
    %53 = arith.addf %50, %52 : vector<64x128xf32>
    %54 = arith.negf %53 : vector<64x128xf32>
    %55 = math.exp %54 : vector<64x128xf32>
    %cst_32 = arith.constant 1.000000e+00 : f32
    %56 = vector.broadcast %cst_32 : f32 to vector<64x128xf32>
    %57 = arith.addf %56, %55 : vector<64x128xf32>
    %58 = arith.divf %56, %57 : vector<64x128xf32>
    %c0_33 = arith.constant 0 : index
    %c0_34 = arith.constant 0 : index
    %59 = vector.load %arg6[%c0_33, %c0_34] : memref<64x128xf32, #tpu.memory_space<vmem>>, vector<64x128xf32>
    tpu.vector_store %arg6[%c0_33, %c0_34], %58 {strides = array<i32>} : memref<64x128xf32, #tpu.memory_space<vmem>>, vector<64x128xf32>,
    return
  }
  func.func @transform_0(%arg0: i32) -> (i32, i32) {
    %c0_i32 = arith.constant 0 : i32
    %c0_i32_0 = arith.constant 0 : i32
    return %arg0, %c0_i32 : i32, i32
  }
  func.func @transform_1(%arg0: i32) -> (i32, i32) {
    %c0_i32 = arith.constant 0 : i32
    %c0_i32_0 = arith.constant 0 : i32
    return %arg0, %c0_i32 : i32, i32
  }
  func.func @transform_2(%arg0: i32) -> (i32, i32) {
    %c0_i32 = arith.constant 0 : i32
    %c0_i32_0 = arith.constant 0 : i32
    %c0_i32_1 = arith.constant 0 : i32
    return %c0_i32, %c0_i32_0 : i32, i32
  }
  func.func @transform_3(%arg0: i32) -> (i32, i32) {
    %c0_i32 = arith.constant 0 : i32
    %c0_i32_0 = arith.constant 0 : i32
    %c0_i32_1 = arith.constant 0 : i32
    return %c0_i32, %c0_i32_0 : i32, i32
  }
  func.func @transform_4(%arg0: i32) -> (i32, i32) {
    %c0_i32 = arith.constant 0 : i32
    %c0_i32_0 = arith.constant 0 : i32
    return %arg0, %c0_i32 : i32, i32
  }
  func.func @transform_5(%arg0: i32) -> (i32, i32) {
    %c0_i32 = arith.constant 0 : i32
    %c0_i32_0 = arith.constant 0 : i32
    return %arg0, %c0_i32 : i32, i32
  }
}

</mosaic_0001>

<llo_original>
// kernel: transt_variant_forward.1
$region0: #{transt_variant_forward.1}
  #allocation0 [shape = 'u32[]', space=smem, size = 0x4, offset = 0x4, fixed_abs, tag = 'smem constant byte address 0x4 - core index']
  #allocation1 [shape = 'u32[144,128]{1,0:T(1,128)}', space=vmem, size = 0x12000, scoped, tag = 'internal scratch']
  %s0 = inlined_call_operand.vmem [shape: f32[32,48], index: 0, kind: input, shape index: {}]
  %s1 = inlined_call_operand.vmem [shape: f32[128,192], index: 1, kind: input, shape index: {}]
  %s2 = inlined_call_operand.vmem [shape: f32[424,48], index: 2, kind: input, shape index: {}]
  %s3 = inlined_call_operand.vmem [shape: f32[176,128], index: 3, kind: input, shape index: {}]
  %s4 = inlined_call_operand.vmem [shape: f32[128,128], index: 4, kind: output, shape index: {0}]
  %s5 = inlined_call_operand.vmem [shape: f32[128,128], index: 5, kind: output, shape index: {1}]
  %6 = xla_tuple %s4, %s5
  %s7 = sld [smem:[#allocation0]]
  $region57: #{transt_variant_forward.1} parent=0
    _
  %s9 = ssub.s32 1, %s7
  %s10 = scalar_select 0, %s9, %s7
  loop: start=0, step=1, limit=4
  $region2: #{transt_variant_forward.1} parent=0 // loop_pre_header
    _
  $region3: #{transt_variant_forward.1} parent=0 // loop_header
    %s12 = sphi 0, %s16
    %p13 = scmp.ge.s32.totalorder %s12, 4
    %s22 = sphi 0, %s24
    %s25 = sphi 0, %s22
    %s26 = sphi 0, %s25
    %s42 = sphi 0, %s26
    %s48 = sphi 0, %s50
    %s51 = sphi 0, %s48
    %s52 = sphi 0, %s51
    %s68 = sphi 0, %s52
    %s72 = sphi 0, %s72
    %s74 = sphi 0, %s72
    %s75 = sphi 0, %s74
    %s89 = sphi 0, %s75
    %s93 = sphi 0, %s93
    %s95 = sphi 0, %s93
    %s96 = sphi 0, %s95
    %s110 = sphi 0, %s96
    %s116 = sphi 0, %s118
    %s119 = sphi 0, %s116
    %s120 = sphi 0, %s119
    %s136 = sphi 0, %s120
    %s142 = sphi 0, %s144
    %s145 = sphi 0, %s142
    %s146 = sphi 0, %s145
    %s162 = sphi 0, %s146
  $region4: #{transt_variant_forward.1} parent=0 // loop_header_branch
    %15 = sbr.rel (%p13) target = $region8
  $region5: #{transt_variant_forward.1} parent=0 // loop_body
    %s17 = ssub.s32 %s12, 1
    %s18 = ssub.s32 %s12, 2
    %s19 = sadd.s32 %s12, 1
    %s20 = ssub.s32 %s12, %s19
    %p21 = scmp.eq.s32.totalorder %s20, 0
    %s23 = sadd.s32 %s22, 1
    %s24 = scalar_select %p21, %s22, %s23
    %p27 = pneg %p21
    %p28 = scmp.eq.s32.totalorder %s12, 1
    %p29 = por %p27, %p28
    %p30 = scmp.ne.s32.totalorder %s22, %s25
    %p31 = scmp.eq.s32.totalorder %s12, 0
    %p32 = por %p30, %p31
    %p33 = scmp.ne.s32.totalorder %s22, %s25
    %p34 = scmp.eq.s32.totalorder %s17, 1
    %p35 = por %p33, %p34
    %p36 = scmp.ne.s32.totalorder %s25, %s26
    %p37 = scmp.eq.s32.totalorder %s17, 0
    %p38 = por %p36, %p37
    %p39 = scmp.ne.s32.totalorder %s25, %s26
    %p40 = scmp.eq.s32.totalorder %s18, 1
    %p41 = por %p39, %p40
    %p43 = scmp.ne.s32.totalorder %s26, %s42
    %p44 = scmp.eq.s32.totalorder %s18, 0
    %p45 = por %p43, %p44
    %s46 = ssub.s32 %s12, %s19
    %p47 = scmp.eq.s32.totalorder %s46, 0
    %s49 = sadd.s32 %s48, 1
    %s50 = scalar_select %p47, %s48, %s49
    %p53 = pneg %p47
    %p54 = scmp.eq.s32.totalorder %s12, 1
    %p55 = por %p53, %p54
    %p56 = scmp.ne.s32.totalorder %s48, %s51
    %p57 = scmp.eq.s32.totalorder %s12, 0
    %p58 = por %p56, %p57
    %p59 = scmp.ne.s32.totalorder %s48, %s51
    %p60 = scmp.eq.s32.totalorder %s17, 1
    %p61 = por %p59, %p60
    %p62 = scmp.ne.s32.totalorder %s51, %s52
    %p63 = scmp.eq.s32.totalorder %s17, 0
    %p64 = por %p62, %p63
    %p65 = scmp.ne.s32.totalorder %s51, %s52
    %p66 = scmp.eq.s32.totalorder %s18, 1
    %p67 = por %p65, %p66
    %p69 = scmp.ne.s32.totalorder %s52, %s68
    %p70 = scmp.eq.s32.totalorder %s18, 0
    %p71 = por %p69, %p70
    %s73 = sadd.s32 %s72, 1
    %p76 = scmp.eq.s32.totalorder %s12, 1
    %p77 = scmp.ne.s32.totalorder %s72, %s74
    %p78 = scmp.eq.s32.totalorder %s12, 0
    %p79 = por %p77, %p78
    %p80 = scmp.ne.s32.totalorder %s72, %s74
    %p81 = scmp.eq.s32.totalorder %s17, 1
    %p82 = por %p80, %p81
    %p83 = scmp.ne.s32.totalorder %s74, %s75
    %p84 = scmp.eq.s32.totalorder %s17, 0
    %p85 = por %p83, %p84
    %p86 = scmp.ne.s32.totalorder %s74, %s75
    %p87 = scmp.eq.s32.totalorder %s18, 1
    %p88 = por %p86, %p87
    %p90 = scmp.ne.s32.totalorder %s75, %s89
    %p91 = scmp.eq.s32.totalorder %s18, 0
    %p92 = por %p90, %p91
    %s94 = sadd.s32 %s93, 1
    %p97 = scmp.eq.s32.totalorder %s12, 1
    %p98 = scmp.ne.s32.totalorder %s93, %s95
    %p99 = scmp.eq.s32.totalorder %s12, 0
    %p100 = por %p98, %p99
    %p101 = scmp.ne.s32.totalorder %s93, %s95
    %p102 = scmp.eq.s32.totalorder %s17, 1
    %p103 = por %p101, %p102
    %p104 = scmp.ne.s32.totalorder %s95, %s96
    %p105 = scmp.eq.s32.totalorder %s17, 0
    %p106 = por %p104, %p105
    %p107 = scmp.ne.s32.totalorder %s95, %s96
    %p108 = scmp.eq.s32.totalorder %s18, 1
    %p109 = por %p107, %p108
    %p111 = scmp.ne.s32.totalorder %s96, %s110
    %p112 = scmp.eq.s32.totalorder %s18, 0
    %p113 = por %p111, %p112
    %s114 = ssub.s32 %s12, %s19
    %p115 = scmp.eq.s32.totalorder %s114, 0
    %s117 = sadd.s32 %s116, 1
    %s118 = scalar_select %p115, %s116, %s117
    %p121 = pneg %p115
    %p122 = scmp.eq.s32.totalorder %s12, 1
    %p123 = por %p121, %p122
    %p124 = scmp.ne.s32.totalorder %s116, %s119
    %p125 = scmp.eq.s32.totalorder %s12, 0
    %p126 = por %p124, %p125
    %p127 = scmp.ne.s32.totalorder %s116, %s119
    %p128 = scmp.eq.s32.totalorder %s17, 1
    %p129 = por %p127, %p128
    %p130 = scmp.ne.s32.totalorder %s119, %s120
    %p131 = scmp.eq.s32.totalorder %s17, 0
    %p132 = por %p130, %p131
    %p133 = scmp.ne.s32.totalorder %s119, %s120
    %p134 = scmp.eq.s32.totalorder %s18, 1
    %p135 = por %p133, %p134
    %p137 = scmp.ne.s32.totalorder %s120, %s136
    %p138 = scmp.eq.s32.totalorder %s18, 0
    %p139 = por %p137, %p138
    %s140 = ssub.s32 %s12, %s19
    %p141 = scmp.eq.s32.totalorder %s140, 0
    %s143 = sadd.s32 %s142, 1
    %s144 = scalar_select %p141, %s142, %s143
    %p147 = pneg %p141
    %p148 = scmp.eq.s32.totalorder %s12, 1
    %p149 = por %p147, %p148
    %p150 = scmp.ne.s32.totalorder %s142, %s145
    %p151 = scmp.eq.s32.totalorder %s12, 0
    %p152 = por %p150, %p151
    %p153 = scmp.ne.s32.totalorder %s142, %s145
    %p154 = scmp.eq.s32.totalorder %s17, 1
    %p155 = por %p153, %p154
    %p156 = scmp.ne.s32.totalorder %s145, %s146
    %p157 = scmp.eq.s32.totalorder %s17, 0
    %p158 = por %p156, %p157
    %p159 = scmp.ne.s32.totalorder %s145, %s146
    %p160 = scmp.eq.s32.totalorder %s18, 1
    %p161 = por %p159, %p160
    %p163 = scmp.ne.s32.totalorder %s146, %s162
    %p164 = scmp.eq.s32.totalorder %s18, 0
    %p165 = por %p163, %p164
    %p166 = scmp.le.s32.totalorder 1, %s12
    %p167 = scmp.lt.s32.totalorder %s12, 3
    %p168 = pnand %p166, %p167
    %p169 = pneg %p168
    // Predicated region
    $region9: #{transt_variant_forward.1} parent=5 // pred_check
      _
    $region10: #{transt_variant_forward.1} parent=5 // pred_check_branch
      %171 = sbr.rel (%p168) target = $region12
    $region11: #{transt_variant_forward.1} parent=5 // pred_region
      %s172 = ssub.s32 %s12, 1
      // Predicated region
      $region13: #{transt_variant_forward.1} parent=11 // pred_check
        %p173 = pneg %p85
      $region14: #{transt_variant_forward.1} parent=11 // pred_check_branch
        %175 = sbr.rel (%p173) target = $region16
      $region15: #{transt_variant_forward.1} parent=11 // pred_region
        _
      $region16: #{transt_variant_forward.1} parent=11 // pred_fallthru
        _
      // Predicated region
      $region17: #{transt_variant_forward.1} parent=11 // pred_check
        %p176 = pneg %p106
      $region18: #{transt_variant_forward.1} parent=11 // pred_check_branch
        %178 = sbr.rel (%p176) target = $region20
      $region19: #{transt_variant_forward.1} parent=11 // pred_region
        _
      $region20: #{transt_variant_forward.1} parent=11 // pred_fallthru
        _
    $region12: #{transt_variant_forward.1} parent=5 // pred_fallthru
      _
    %p179 = scmp.lt.s32.totalorder %s12, 2
    // Predicated region
    $region21: #{transt_variant_forward.1} parent=5 // pred_check
      %p180 = pneg %p179
    $region22: #{transt_variant_forward.1} parent=5 // pred_check_branch
      %182 = sbr.rel (%p180) target = $region24
    $region23: #{transt_variant_forward.1} parent=5 // pred_region
      // Predicated region
      $region25: #{transt_variant_forward.1} parent=23 // pred_check
        %p183 = pneg %p32
      $region26: #{transt_variant_forward.1} parent=23 // pred_check_branch
        %185 = sbr.rel (%p183) target = $region28
      $region27: #{transt_variant_forward.1} parent=23 // pred_region
        %s186 = smul.u32 2, %s12
        %p187 = scmp.lt.s32.totalorder %s186, 3
        %s188 = scalar_select %p187, %s186, 3
        %s189 = smul.addr %s188, 8
        %s190 = scalar_lea.vmem %s0, %s189
        %s191 = smul.u32 2, %s12
      $region28: #{transt_variant_forward.1} parent=23 // pred_fallthru
        _
      // Predicated region
      $region29: #{transt_variant_forward.1} parent=23 // pred_check
        %p192 = pneg %p58
      $region30: #{transt_variant_forward.1} parent=23 // pred_check_branch
        %194 = sbr.rel (%p192) target = $region32
      $region31: #{transt_variant_forward.1} parent=23 // pred_region
        %s195 = smul.u32 8, %s12
        %p196 = scmp.lt.s32.totalorder %s195, 15
        %s197 = scalar_select %p196, %s195, 15
        %s198 = smul.addr %s197, 2
        %s199 = smul.addr %s198, 8
        %s200 = scalar_lea.vmem %s1, %s199
        %s201 = smul.u32 8, %s12
      $region32: #{transt_variant_forward.1} parent=23 // pred_fallthru
        _
    $region24: #{transt_variant_forward.1} parent=5 // pred_fallthru
      _
    %p202 = scmp.le.s32.totalorder 1, %s12
    %p203 = scmp.lt.s32.totalorder %s12, 3
    %p204 = pnand %p202, %p203
    %p205 = pneg %p204
    // Predicated region
    $region33: #{transt_variant_forward.1} parent=5 // pred_check
      _
    $region34: #{transt_variant_forward.1} parent=5 // pred_check_branch
      %207 = sbr.rel (%p204) target = $region36
    $region35: #{transt_variant_forward.1} parent=5 // pred_region
      %s208 = ssub.s32 %s12, 1
      %s209 = smul.u32 2, %s17
      %p210 = scmp.lt.s32.totalorder %s209, 3
      %s211 = scalar_select %p210, %s209, 3
      %s212 = smul.addr %s211, 8
      %s213 = scalar_lea.vmem %s0, %s212
      %p214 = pneg %p38
      %p215 = pneg %p35
      %s216 = smul.u32 8, %s17
      %p217 = scmp.lt.s32.totalorder %s216, 15
      %s218 = scalar_select %p217, %s216, 15
      %s219 = smul.addr %s218, 2
      %s220 = smul.addr %s219, 8
      %s221 = scalar_lea.vmem %s1, %s220
      %p222 = pneg %p64
      %p223 = pneg %p61
      %p224 = pneg %p85
      %p225 = pneg %p82
      %p226 = pneg %p106
      %p227 = pneg %p103
      %p228 = pneg %p132
      %p229 = pneg %p129
      %s230 = smul.u32 8, %s17
      %p231 = scmp.lt.s32.totalorder %s230, 15
      %s232 = scalar_select %p231, %s230, 15
      %s233 = smul.addr %s232, 8
      %s234 = scalar_lea.vmem %s4, %s233
      %p235 = pneg %p158
      %p236 = pneg %p155
      %s237 = smul.u32 8, %s17
      %p238 = scmp.lt.s32.totalorder %s237, 15
      %s239 = scalar_select %p238, %s237, 15
      %s240 = smul.addr %s239, 8
      %s241 = scalar_lea.vmem %s5, %s240
      %s242 = smul.u32 2, %s17
      %p243 = scmp.lt.s32.totalorder %s242, 3
      %s244 = scalar_select %p243, %s242, 3
      %s245 = smul.addr %s244, 8
      %s246 = scalar_lea.vmem %s0, %s245
      %s247 = smul.u32 2, %s17
      %s248 = smul.u32 8, %s17
      %p249 = scmp.lt.s32.totalorder %s248, 15
      %s250 = scalar_select %p249, %s248, 15
      %s251 = smul.addr %s250, 2
      %s252 = smul.addr %s251, 8
      %s253 = scalar_lea.vmem %s1, %s252
      %s254 = smul.u32 8, %s17
      %s255 = smul.u32 8, %s17
      %p256 = scmp.lt.s32.totalorder %s255, 15
      %s257 = scalar_select %p256, %s255, 15
      %s258 = smul.addr %s257, 8
      %s259 = scalar_lea.vmem %s4, %s258
      %s260 = smul.u32 8, %s17
      %s261 = smul.u32 8, %s17
      %p262 = scmp.lt.s32.totalorder %s261, 15
      %s263 = scalar_select %p262, %s261, 15
      %s264 = smul.addr %s263, 8
      %s265 = scalar_lea.vmem %s5, %s264
      %s266 = smul.u32 8, %s17
      %v267 = vld [vmem:[%s246] sm:$0xff]
      %v268 = vld [vmem:[%s246 + $0x8] sm:$0xff]
      %v269 = vld [vmem:[%s253] sm:$0xff]
      %v270 = vld [vmem:[%s253 + $0x8] sm:$0xff]
      %v271 = vld [vmem:[%s253 + $0x10] sm:$0xff]
      %v272 = vld [vmem:[%s253 + $0x18] sm:$0xff]
      %v273 = vld [vmem:[%s253 + $0x20] sm:$0xff]
      %v274 = vld [vmem:[%s253 + $0x28] sm:$0xff]
      %v275 = vld [vmem:[%s253 + $0x30] sm:$0xff]
      %v276 = vld [vmem:[%s253 + $0x38] sm:$0xff]
      %v277 = vld [vmem:[%s253 + $0x40] sm:$0xff]
      %v278 = vld [vmem:[%s253 + $0x48] sm:$0xff]
      %v279 = vld [vmem:[%s253 + $0x50] sm:$0xff]
      %v280 = vld [vmem:[%s253 + $0x58] sm:$0xff]
      %v281 = vld [vmem:[%s253 + $0x60] sm:$0xff]
      %v282 = vld [vmem:[%s253 + $0x68] sm:$0xff]
      %v283 = vld [vmem:[%s253 + $0x70] sm:$0xff]
      %v284 = vld [vmem:[%s253 + $0x78] sm:$0xff]
      %v285 = vld [vmem:[%s2 + $0xc0] sm:$0xff]
      %v286 = vld [vmem:[%s2 + $0xc8] sm:$0xff]
      %v287 = vld [vmem:[%s2 + $0xd0] sm:$0xff]
      %v288 = vld [vmem:[%s2 + $0xd8] sm:$0xff]
      %v289 = vld [vmem:[%s2 + $0xe0] sm:$0xff]
      %v290 = vld [vmem:[%s2 + $0xe8] sm:$0xff]
      %v291 = vld [vmem:[%s2 + $0x140] sm:$0x1]
      %v292 = vlaneseq
      %v293 = vshrl.u32 %v292, 7
      %v294 = vsub.s32 0, %v293
      %v295 = vrot.slane %v291, %v294
      %vm296 = vcmask 392192
      %v298 = vsel %vm296, %v267, 0
      %v301 = vsel %vm296, %v268, 0
      %303 = vmatprep.subr.mxu0 0.0
      %304 = vmatpush1.msra.mxu0 %v285
      %305 = vmatprep.subr.mxu0 0.0
      %306 = vmatpush1.msra.mxu0 %v286
      %307 = vmatprep.subr.mxu0 0.0
      %308 = vmatpush1.msra.mxu0 %v287
      %309 = vmatprep.subr.mxu0 0.0
      %310 = vmatpush1.msra.mxu0 %v288
      %311 = vmatprep.subr.mxu0 0.0
      %312 = vmatpush1.msra.mxu0 %v289
      %313 = vmatprep.subr.mxu0 0.0
      %314 = vmatpush1.msra.mxu0 %v290
      %315 = vmatprep.subr.mxu0 0.0
      %316 = vmatpush1.msra.mxu0 0.0
      %317 = vmatprep.subr.mxu0 0.0
      %318 = vmatpush1.msra.mxu0 0.0
      %319 = vmatprep.subr.mxu0 0.0
      %320 = vmatpush1.msra.mxu0 0.0
      %321 = vmatprep.subr.mxu0 0.0
      %322 = vmatpush1.msra.mxu0 0.0
      %323 = vmatprep.subr.mxu0 0.0
      %324 = vmatpush1.msra.mxu0 0.0
      %325 = vmatprep.subr.mxu0 0.0
      %326 = vmatpush1.msra.mxu0 0.0
      %327 = vmatprep.subr.mxu0 0.0
      %328 = vmatpush1.msra.mxu0 0.0
      %329 = vmatprep.subr.mxu0 0.0
      %330 = vmatpush1.msra.mxu0 0.0
      %331 = vmatprep.subr.mxu0 0.0
      %332 = vmatpush1.msra.mxu0 0.0
      %333 = vmatprep.subr.mxu0 0.0
      %334 = vmatpush1.msra.mxu0 0.0
      %335 = vmatprep.subr.mxu0 0.0
      %336 = vmatpush1.msra.mxu0 0.0
      %337 = vmatprep.subr.mxu0 0.0
      %338 = vmatpush1.msra.mxu0 0.0
      %339 = vmatprep.subr.mxu0 0.0
      %340 = vmatpush1.msra.mxu0 0.0
      %341 = vmatprep.subr.mxu0 0.0
      %342 = vmatpush1.msra.mxu0 0.0
      %343 = vmatprep.subr.mxu0 0.0
      %344 = vmatpush1.msra.mxu0 0.0
      %345 = vmatprep.subr.mxu0 0.0
      %346 = vmatpush1.msra.mxu0 0.0
      %347 = vmatprep.subr.mxu0 0.0
      %348 = vmatpush1.msra.mxu0 0.0
      %349 = vmatprep.subr.mxu0 0.0
      %350 = vmatpush1.msra.mxu0 0.0
      %351 = vmatprep.subr.mxu0 0.0
      %352 = vmatpush1.msra.mxu0 0.0
      %353 = vmatprep.subr.mxu0 0.0
      %354 = vmatpush1.msra.mxu0 0.0
      %355 = vmatprep.subr.mxu0 0.0
      %356 = vmatpush1.msra.mxu0 0.0
      %357 = vmatprep.subr.mxu0 0.0
      %358 = vmatpush1.msra.mxu0 0.0
      %359 = vmatprep.subr.mxu0 0.0
      %360 = vmatpush1.msra.mxu0 0.0
      %361 = vmatprep.subr.mxu0 0.0
      %362 = vmatpush1.msra.mxu0 0.0
      %363 = vmatprep.subr.mxu0 0.0
      %364 = vmatpush1.msra.mxu0 0.0
      %365 = vmatprep.subr.mxu0 0.0
      %366 = vmatpush1.msra.mxu0 0.0
      %367 = vmatprep.mubr.f32.mxu0 0.0
      %368 = vmatmul.mubr.f32.gmra.mrb[0].mxu0 %v298
      %v369 = vpop.f32.mrb[0].mxu0
      %v370 = vadd.f32 %v295, %v369
      %v371 = vpop.f32.mrb[0].mxu0
      %372 = vmatprep.mubr.f32.mxu0 0.0
      %373 = vmatmul.mubr.f32.gmra.mrb[0].mxu0 %v301
      %v374 = vpop.f32.mrb[0].mxu0
      %v375 = vadd.f32 %v295, %v374
      %v376 = vpop.f32.mrb[0].mxu0
      %377 = vdwg.mxu0
      %v378 = vld [vmem:[%s2] sm:$0xff]
      %v379 = vld [vmem:[%s2 + $0x8] sm:$0xff]
      %v380 = vld [vmem:[%s2 + $0x10] sm:$0xff]
      %v381 = vld [vmem:[%s2 + $0x18] sm:$0xff]
      %v382 = vld [vmem:[%s2 + $0x20] sm:$0xff]
      %v383 = vld [vmem:[%s2 + $0x28] sm:$0xff]
      %v384 = vld [vmem:[%s2 + $0x30] sm:$0xff]
      %v385 = vld [vmem:[%s2 + $0x38] sm:$0xff]
      %v386 = vld [vmem:[%s2 + $0x40] sm:$0xff]
      %v387 = vld [vmem:[%s2 + $0x48] sm:$0xff]
      %v388 = vld [vmem:[%s2 + $0x50] sm:$0xff]
      %v389 = vld [vmem:[%s2 + $0x58] sm:$0xff]
      %v390 = vld [vmem:[%s2 + $0x60] sm:$0xff]
      %v391 = vld [vmem:[%s2 + $0x68] sm:$0xff]
      %v392 = vld [vmem:[%s2 + $0x70] sm:$0xff]
      %v393 = vld [vmem:[%s2 + $0x78] sm:$0xff]
      %v394 = vld [vmem:[%s2 + $0x80] sm:$0xff]
      %v395 = vld [vmem:[%s2 + $0x88] sm:$0xff]
      %v396 = vld [vmem:[%s2 + $0x90] sm:$0xff]
      %v397 = vld [vmem:[%s2 + $0x98] sm:$0xff]
      %v398 = vld [vmem:[%s2 + $0xa0] sm:$0xff]
      %v399 = vld [vmem:[%s2 + $0xa8] sm:$0xff]
      %v400 = vld [vmem:[%s2 + $0xb0] sm:$0xff]
      %v401 = vld [vmem:[%s2 + $0xb8] sm:$0xff]
      %v402 = vld [vmem:[%s2 + $0x138] sm:$0x1]
      %v403 = vlaneseq
      %v404 = vshrl.u32 %v403, 7
      %v405 = vsub.s32 0, %v404
      %v406 = vrot.slane %v402, %v405
      %vm407 = vcmask 523264
      %v409 = vsel %vm407, %v270, 0
      %v412 = vsel %vm407, %v272, 0
      %v415 = vsel %vm407, %v274, 0
      %v418 = vsel %vm407, %v276, 0
      %v421 = vsel %vm407, %v278, 0
      %v424 = vsel %vm407, %v280, 0
      %v427 = vsel %vm407, %v282, 0
      %v430 = vsel %vm407, %v284, 0
      %432 = vmatprep.subr.mxu0 0.0
      %433 = vmatpush1.msra.mxu0 %v378
      %434 = vmatprep.subr.mxu0 0.0
      %435 = vmatpush1.msra.mxu0 %v379
      %436 = vmatprep.subr.mxu0 0.0
      %437 = vmatpush1.msra.mxu0 %v380
      %438 = vmatprep.subr.mxu0 0.0
      %439 = vmatpush1.msra.mxu0 %v381
      %440 = vmatprep.subr.mxu0 0.0
      %441 = vmatpush1.msra.mxu0 %v382
      %442 = vmatprep.subr.mxu0 0.0
      %443 = vmatpush1.msra.mxu0 %v383
      %444 = vmatprep.subr.mxu0 0.0
      %445 = vmatpush1.msra.mxu0 %v384
      %446 = vmatprep.subr.mxu0 0.0
      %447 = vmatpush1.msra.mxu0 %v385
      %448 = vmatprep.subr.mxu0 0.0
      %449 = vmatpush1.msra.mxu0 %v386
      %450 = vmatprep.subr.mxu0 0.0
      %451 = vmatpush1.msra.mxu0 %v387
      %452 = vmatprep.subr.mxu0 0.0
      %453 = vmatpush1.msra.mxu0 %v388
      %454 = vmatprep.subr.mxu0 0.0
      %455 = vmatpush1.msra.mxu0 %v389
      %456 = vmatprep.subr.mxu0 0.0
      %457 = vmatpush1.msra.mxu0 %v390
      %458 = vmatprep.subr.mxu0 0.0
      %459 = vmatpush1.msra.mxu0 %v391
      %460 = vmatprep.subr.mxu0 0.0
      %461 = vmatpush1.msra.mxu0 %v392
      %462 = vmatprep.subr.mxu0 0.0
      %463 = vmatpush1.msra.mxu0 %v393
      %464 = vmatprep.subr.mxu0 0.0
      %465 = vmatpush1.msra.mxu0 %v394
      %466 = vmatprep.subr.mxu0 0.0
      %467 = vmatpush1.msra.mxu0 %v395
      %468 = vmatprep.subr.mxu0 0.0
      %469 = vmatpush1.msra.mxu0 %v396
      %470 = vmatprep.subr.mxu0 0.0
      %471 = vmatpush1.msra.mxu0 %v397
      %472 = vmatprep.subr.mxu0 0.0
      %473 = vmatpush1.msra.mxu0 %v398
      %474 = vmatprep.subr.mxu0 0.0
      %475 = vmatpush1.msra.mxu0 %v399
      %476 = vmatprep.subr.mxu0 0.0
      %477 = vmatpush1.msra.mxu0 %v400
      %478 = vmatprep.subr.mxu0 0.0
      %479 = vmatpush1.msra.mxu0 %v401
      %480 = vmatprep.subr.mxu0 0.0
      %481 = vmatpush1.msra.mxu0 0.0
      %482 = vmatprep.subr.mxu0 0.0
      %483 = vmatpush1.msra.mxu0 0.0
      %484 = vmatprep.subr.mxu0 0.0
      %485 = vmatpush1.msra.mxu0 0.0
      %486 = vmatprep.subr.mxu0 0.0
      %487 = vmatpush1.msra.mxu0 0.0
      %488 = vmatprep.subr.mxu0 0.0
      %489 = vmatpush1.msra.mxu0 0.0
      %490 = vmatprep.subr.mxu0 0.0
      %491 = vmatpush1.msra.mxu0 0.0
      %492 = vmatprep.subr.mxu0 0.0
      %493 = vmatpush1.msra.mxu0 0.0
      %494 = vmatprep.subr.mxu0 0.0
      %495 = vmatpush1.msra.mxu0 0.0
      %496 = vmatprep.mubr.f32.mxu0 %v409
      %497 = vmatmul.mubr.f32.gmra.mrb[0].mxu0 %v269
      %v498 = vpop.f32.mrb[0].mxu0
      %v499 = vadd.f32 %v406, %v498
      %v500 = vpop.f32.mrb[0].mxu0
      %501 = vmatprep.mubr.f32.mxu0 %v412
      %502 = vmatmul.mubr.f32.gmra.mrb[0].mxu0 %v271
      %v503 = vpop.f32.mrb[0].mxu0
      %v504 = vadd.f32 %v406, %v503
      %v505 = vpop.f32.mrb[0].mxu0
      %506 = vmatprep.mubr.f32.mxu0 %v415
      %507 = vmatmul.mubr.f32.gmra.mrb[0].mxu0 %v273
      %v508 = vpop.f32.mrb[0].mxu0
      %v509 = vadd.f32 %v406, %v508
      %v510 = vpop.f32.mrb[0].mxu0
      %511 = vmatprep.mubr.f32.mxu0 %v418
      %512 = vmatmul.mubr.f32.gmra.mrb[0].mxu0 %v275
      %v513 = vpop.f32.mrb[0].mxu0
      %v514 = vadd.f32 %v406, %v513
      %v515 = vpop.f32.mrb[0].mxu0
      %516 = vmatprep.mubr.f32.mxu0 %v421
      %517 = vmatmul.mubr.f32.gmra.mrb[0].mxu0 %v277
      %v518 = vpop.f32.mrb[0].mxu0
      %v519 = vadd.f32 %v406, %v518
      %v520 = vpop.f32.mrb[0].mxu0
      %521 = vmatprep.mubr.f32.mxu0 %v424
      %522 = vmatmul.mubr.f32.gmra.mrb[0].mxu0 %v279
      %v523 = vpop.f32.mrb[0].mxu0
      %v524 = vadd.f32 %v406, %v523
      %v525 = vpop.f32.mrb[0].mxu0
      %526 = vmatprep.mubr.f32.mxu0 %v427
      %527 = vmatmul.mubr.f32.gmra.mrb[0].mxu0 %v281
      %v528 = vpop.f32.mrb[0].mxu0
      %v529 = vadd.f32 %v406, %v528
      %v530 = vpop.f32.mrb[0].mxu0
      %531 = vmatprep.mubr.f32.mxu0 %v430
      %532 = vmatmul.mubr.f32.gmra.mrb[0].mxu0 %v283
      %v533 = vpop.f32.mrb[0].mxu0
      %v534 = vadd.f32 %v406, %v533
      %v535 = vpop.f32.mrb[0].mxu0
      %536 = vdwg.mxu0
      %v537 = vld [vmem:[%s2 + $0x120] sm:$0xff]
      %v538 = vld [vmem:[%s2 + $0x128] sm:$0xff]
      %v539 = vld [vmem:[%s2 + $0x130] sm:$0xff]
      %v540 = vld [vmem:[%s2 + $0x150] sm:$0x1]
      %v541 = vlaneseq
      %v542 = vshrl.u32 %v541, 7
      %v543 = vsub.s32 0, %v542
      %v544 = vrot.slane %v540, %v543
      %vm545 = vcmask 195584
      %v547 = vsel %vm545, %v370, 0
      %v550 = vsel %vm545, %v375, 0
      %552 = vmatprep.subr.mxu0 0.0
      %553 = vmatpush1.msra.mxu0 %v537
      %554 = vmatprep.subr.mxu0 0.0
      %555 = vmatpush1.msra.mxu0 %v538
      %556 = vmatprep.subr.mxu0 0.0
      %557 = vmatpush1.msra.mxu0 %v539
      %558 = vmatprep.subr.mxu0 0.0
      %559 = vmatpush1.msra.mxu0 0.0
      %560 = vmatprep.subr.mxu0 0.0
      %561 = vmatpush1.msra.mxu0 0.0
      %562 = vmatprep.subr.mxu0 0.0
      %563 = vmatpush1.msra.mxu0 0.0
      %564 = vmatprep.subr.mxu0 0.0
      %565 = vmatpush1.msra.mxu0 0.0
      %566 = vmatprep.subr.mxu0 0.0
      %567 = vmatpush1.msra.mxu0 0.0
      %568 = vmatprep.subr.mxu0 0.0
      %569 = vmatpush1.msra.mxu0 0.0
      %570 = vmatprep.subr.mxu0 0.0
      %571 = vmatpush1.msra.mxu0 0.0
      %572 = vmatprep.subr.mxu0 0.0
      %573 = vmatpush1.msra.mxu0 0.0
      %574 = vmatprep.subr.mxu0 0.0
      %575 = vmatpush1.msra.mxu0 0.0
      %576 = vmatprep.subr.mxu0 0.0
      %577 = vmatpush1.msra.mxu0 0.0
      %578 = vmatprep.subr.mxu0 0.0
      %579 = vmatpush1.msra.mxu0 0.0
      %580 = vmatprep.subr.mxu0 0.0
      %581 = vmatpush1.msra.mxu0 0.0
      %582 = vmatprep.subr.mxu0 0.0
      %583 = vmatpush1.msra.mxu0 0.0
      %584 = vmatprep.subr.mxu0 0.0
      %585 = vmatpush1.msra.mxu0 0.0
      %586 = vmatprep.subr.mxu0 0.0
      %587 = vmatpush1.msra.mxu0 0.0
      %588 = vmatprep.subr.mxu0 0.0
      %589 = vmatpush1.msra.mxu0 0.0
      %590 = vmatprep.subr.mxu0 0.0
      %591 = vmatpush1.msra.mxu0 0.0
      %592 = vmatprep.subr.mxu0 0.0
      %593 = vmatpush1.msra.mxu0 0.0
      %594 = vmatprep.subr.mxu0 0.0
      %595 = vmatpush1.msra.mxu0 0.0
      %596 = vmatprep.subr.mxu0 0.0
      %597 = vmatpush1.msra.mxu0 0.0
      %598 = vmatprep.subr.mxu0 0.0
      %599 = vmatpush1.msra.mxu0 0.0
      %600 = vmatprep.subr.mxu0 0.0
      %601 = vmatpush1.msra.mxu0 0.0
      %602 = vmatprep.subr.mxu0 0.0
      %603 = vmatpush1.msra.mxu0 0.0
      %604 = vmatprep.subr.mxu0 0.0
      %605 = vmatpush1.msra.mxu0 0.0
      %606 = vmatprep.subr.mxu0 0.0
      %607 = vmatpush1.msra.mxu0 0.0
      %608 = vmatprep.subr.mxu0 0.0
      %609 = vmatpush1.msra.mxu0 0.0
      %610 = vmatprep.subr.mxu0 0.0
      %611 = vmatpush1.msra.mxu0 0.0
      %612 = vmatprep.subr.mxu0 0.0
      %613 = vmatpush1.msra.mxu0 0.0
      %614 = vmatprep.subr.mxu0 0.0
      %615 = vmatpush1.msra.mxu0 0.0
      %616 = vmatprep.mubr.f32.mxu0 0.0
      %617 = vmatmul.mubr.f32.gmra.mrb[0].mxu0 %v547
      %v618 = vpop.f32.mrb[0].mxu0
      %v619 = vadd.f32 %v544, %v618
      %v620 = vpop.f32.mrb[0].mxu0
      %621 = vmatprep.mubr.f32.mxu0 0.0
      %622 = vmatmul.mubr.f32.gmra.mrb[0].mxu0 %v550
      %v623 = vpop.f32.mrb[0].mxu0
      %v624 = vadd.f32 %v544, %v623
      %v625 = vpop.f32.mrb[0].mxu0
      %626 = vdwg.mxu0
      %v627 = vld [vmem:[%s2 + $0xf0] sm:$0xff]
      %v628 = vld [vmem:[%s2 + $0xf8] sm:$0xff]
      %v629 = vld [vmem:[%s2 + $0x100] sm:$0xff]
      %v630 = vld [vmem:[%s2 + $0x108] sm:$0xff]
      %v631 = vld [vmem:[%s2 + $0x110] sm:$0xff]
      %v632 = vld [vmem:[%s2 + $0x118] sm:$0xff]
      %v633 = vld [vmem:[%s2 + $0x148] sm:$0x1]
      %v634 = vlaneseq
      %v635 = vshrl.u32 %v634, 7
      %v636 = vsub.s32 0, %v635
      %v637 = vrot.slane %v633, %v636
      %v639 = vsel %vm296, %v499, 0
      %v642 = vsel %vm296, %v504, 0
      %v645 = vsel %vm296, %v509, 0
      %v648 = vsel %vm296, %v514, 0
      %v651 = vsel %vm296, %v519, 0
      %v654 = vsel %vm296, %v524, 0
      %v657 = vsel %vm296, %v529, 0
      %v660 = vsel %vm296, %v534, 0
      %662 = vmatprep.subr.mxu0 0.0
      %663 = vmatpush1.msra.mxu0 %v627
      %664 = vmatprep.subr.mxu0 0.0
      %665 = vmatpush1.msra.mxu0 %v628
      %666 = vmatprep.subr.mxu0 0.0
      %667 = vmatpush1.msra.mxu0 %v629
      %668 = vmatprep.subr.mxu0 0.0
      %669 = vmatpush1.msra.mxu0 %v630
      %670 = vmatprep.subr.mxu0 0.0
      %671 = vmatpush1.msra.mxu0 %v631
      %672 = vmatprep.subr.mxu0 0.0
      %673 = vmatpush1.msra.mxu0 %v632
      %674 = vmatprep.subr.mxu0 0.0
      %675 = vmatpush1.msra.mxu0 0.0
      %676 = vmatprep.subr.mxu0 0.0
      %677 = vmatpush1.msra.mxu0 0.0
      %678 = vmatprep.subr.mxu0 0.0
      %679 = vmatpush1.msra.mxu0 0.0
      %680 = vmatprep.subr.mxu0 0.0
      %681 = vmatpush1.msra.mxu0 0.0
      %682 = vmatprep.subr.mxu0 0.0
      %683 = vmatpush1.msra.mxu0 0.0
      %684 = vmatprep.subr.mxu0 0.0
      %685 = vmatpush1.msra.mxu0 0.0
      %686 = vmatprep.subr.mxu0 0.0
      %687 = vmatpush1.msra.mxu0 0.0
      %688 = vmatprep.subr.mxu0 0.0
      %689 = vmatpush1.msra.mxu0 0.0
      %690 = vmatprep.subr.mxu0 0.0
      %691 = vmatpush1.msra.mxu0 0.0
      %692 = vmatprep.subr.mxu0 0.0
      %693 = vmatpush1.msra.mxu0 0.0
      %694 = vmatprep.subr.mxu0 0.0
      %695 = vmatpush1.msra.mxu0 0.0
      %696 = vmatprep.subr.mxu0 0.0
      %697 = vmatpush1.msra.mxu0 0.0
      %698 = vmatprep.subr.mxu0 0.0
      %699 = vmatpush1.msra.mxu0 0.0
      %700 = vmatprep.subr.mxu0 0.0
      %701 = vmatpush1.msra.mxu0 0.0
      %702 = vmatprep.subr.mxu0 0.0
      %703 = vmatpush1.msra.mxu0 0.0
      %704 = vmatprep.subr.mxu0 0.0
      %705 = vmatpush1.msra.mxu0 0.0
      %706 = vmatprep.subr.mxu0 0.0
      %707 = vmatpush1.msra.mxu0 0.0
      %708 = vmatprep.subr.mxu0 0.0
      %709 = vmatpush1.msra.mxu0 0.0
      %710 = vmatprep.subr.mxu0 0.0
      %711 = vmatpush1.msra.mxu0 0.0
      %712 = vmatprep.subr.mxu0 0.0
      %713 = vmatpush1.msra.mxu0 0.0
      %714 = vmatprep.subr.mxu0 0.0
      %715 = vmatpush1.msra.mxu0 0.0
      %716 = vmatprep.subr.mxu0 0.0
      %717 = vmatpush1.msra.mxu0 0.0
      %718 = vmatprep.subr.mxu0 0.0
      %719 = vmatpush1.msra.mxu0 0.0
      %720 = vmatprep.subr.mxu0 0.0
      %721 = vmatpush1.msra.mxu0 0.0
      %722 = vmatprep.subr.mxu0 0.0
      %723 = vmatpush1.msra.mxu0 0.0
      %724 = vmatprep.subr.mxu0 0.0
      %725 = vmatpush1.msra.mxu0 0.0
      %726 = vmatprep.mubr.f32.mxu0 0.0
      %727 = vmatmul.mubr.f32.gmra.mrb[0].mxu0 %v639
      %v728 = vpop.f32.mrb[0].mxu0
      %v729 = vadd.f32 %v637, %v728
      %v730 = vpop.f32.mrb[0].mxu0
      %731 = vmatprep.mubr.f32.mxu0 0.0
      %732 = vmatmul.mubr.f32.gmra.mrb[0].mxu0 %v642
      %v733 = vpop.f32.mrb[0].mxu0
      %v734 = vadd.f32 %v637, %v733
      %v735 = vpop.f32.mrb[0].mxu0
      %736 = vmatprep.mubr.f32.mxu0 0.0
      %737 = vmatmul.mubr.f32.gmra.mrb[0].mxu0 %v645
      %v738 = vpop.f32.mrb[0].mxu0
      %v739 = vadd.f32 %v637, %v738
      %v740 = vpop.f32.mrb[0].mxu0
      %741 = vmatprep.mubr.f32.mxu0 0.0
      %742 = vmatmul.mubr.f32.gmra.mrb[0].mxu0 %v648
      %v743 = vpop.f32.mrb[0].mxu0
      %v744 = vadd.f32 %v637, %v743
      %v745 = vpop.f32.mrb[0].mxu0
      %746 = vmatprep.mubr.f32.mxu0 0.0
      %747 = vmatmul.mubr.f32.gmra.mrb[0].mxu0 %v651
      %v748 = vpop.f32.mrb[0].mxu0
      %v749 = vadd.f32 %v637, %v748
      %v750 = vpop.f32.mrb[0].mxu0
      %751 = vmatprep.mubr.f32.mxu0 0.0
      %752 = vmatmul.mubr.f32.gmra.mrb[0].mxu0 %v654
      %v753 = vpop.f32.mrb[0].mxu0
      %v754 = vadd.f32 %v637, %v753
      %v755 = vpop.f32.mrb[0].mxu0
      %756 = vmatprep.mubr.f32.mxu0 0.0
      %757 = vmatmul.mubr.f32.gmra.mrb[0].mxu0 %v657
      %v758 = vpop.f32.mrb[0].mxu0
      %v759 = vadd.f32 %v637, %v758
      %v760 = vpop.f32.mrb[0].mxu0
      %761 = vmatprep.mubr.f32.mxu0 0.0
      %762 = vmatmul.mubr.f32.gmra.mrb[0].mxu0 %v660
      %v763 = vpop.f32.mrb[0].mxu0
      %v764 = vadd.f32 %v637, %v763
      %v765 = vpop.f32.mrb[0].mxu0
      %766 = vdwg.mxu0
      %v767 = vld [vmem:[%s2 + $0x158] sm:$0xff]
      %v768 = vld [vmem:[%s2 + $0x160] sm:$0xff]
      %v769 = vld [vmem:[%s2 + $0x168] sm:$0xff]
      %v770 = vld [vmem:[%s2 + $0x170] sm:$0xff]
      %v771 = vld [vmem:[%s2 + $0x178] sm:$0xff]
      %v772 = vld [vmem:[%s2 + $0x180] sm:$0xff]
      %v773 = vld [vmem:[%s2 + $0x188] sm:$0xff]
      %v774 = vld [vmem:[%s2 + $0x190] sm:$0xff]
      %v775 = vadd.f32 %v729, %v767
      %v776 = vadd.f32 %v734, %v768
      %v777 = vadd.f32 %v739, %v769
      %v778 = vadd.f32 %v744, %v770
      %v779 = vadd.f32 %v749, %v771
      %v780 = vadd.f32 %v754, %v772
      %v781 = vadd.f32 %v759, %v773
      %v782 = vadd.f32 %v764, %v774
      %v783 = vld [vmem:[%s2 + $0x198] sm:$0xff]
      %v784 = vld [vmem:[%s2 + $0x1a0] sm:$0xff]
      %v785 = vadd.f32 %v619, %v783
      %v786 = vadd.f32 %v624, %v784
      %v787 = vmul.f32 %v785, 0.17677669
      %v788 = vmul.f32 %v786, 0.17677669
      %vm789 = vcmask 261120
      %v791 = vsel %vm789, %v775, 0
      %v794 = vsel %vm789, %v776, 0
      %v797 = vsel %vm789, %v777, 0
      %v800 = vsel %vm789, %v778, 0
      %v803 = vsel %vm789, %v779, 0
      %v806 = vsel %vm789, %v780, 0
      %v809 = vsel %vm789, %v781, 0
      %v812 = vsel %vm789, %v782, 0
      %v815 = vsel %vm789, %v787, 0
      %v818 = vsel %vm789, %v788, 0
      %820 = vmatprep.subr.mxu0 0.0
      %821 = vmatpush1.xpose.msra.mxu0 %v815
      %822 = vmatprep.subr.mxu0 0.0
      %823 = vmatpush1.xpose.msra.mxu0 %v818
      %824 = vmatprep.subr.mxu0 0.0
      %825 = vmatpush1.xpose.msra.mxu0 0.0
      %826 = vmatprep.subr.mxu0 0.0
      %827 = vmatpush1.xpose.msra.mxu0 0.0
      %828 = vmatprep.subr.mxu0 0.0
      %829 = vmatpush1.xpose.msra.mxu0 0.0
      %830 = vmatprep.subr.mxu0 0.0
      %831 = vmatpush1.xpose.msra.mxu0 0.0
      %832 = vmatprep.subr.mxu0 0.0
      %833 = vmatpush1.xpose.msra.mxu0 0.0
      %834 = vmatprep.subr.mxu0 0.0
      %835 = vmatpush1.xpose.msra.mxu0 0.0
      %836 = vmatprep.subr.mxu0 0.0
      %837 = vmatpush1.xpose.msra.mxu0 0.0
      %838 = vmatprep.subr.mxu0 0.0
      %839 = vmatpush1.xpose.msra.mxu0 0.0
      %840 = vmatprep.subr.mxu0 0.0
      %841 = vmatpush1.xpose.msra.mxu0 0.0
      %842 = vmatprep.subr.mxu0 0.0
      %843 = vmatpush1.xpose.msra.mxu0 0.0
      %844 = vmatprep.subr.mxu0 0.0
      %845 = vmatpush1.xpose.msra.mxu0 0.0
      %846 = vmatprep.subr.mxu0 0.0
      %847 = vmatpush1.xpose.msra.mxu0 0.0
      %848 = vmatprep.subr.mxu0 0.0
      %849 = vmatpush1.xpose.msra.mxu0 0.0
      %850 = vmatprep.subr.mxu0 0.0
      %851 = vmatpush1.xpose.msra.mxu0 0.0
      %852 = vmatprep.subr.mxu0 0.0
      %853 = vmatpush1.xpose.msra.mxu0 0.0
      %854 = vmatprep.subr.mxu0 0.0
      %855 = vmatpush1.xpose.msra.mxu0 0.0
      %856 = vmatprep.subr.mxu0 0.0
      %857 = vmatpush1.xpose.msra.mxu0 0.0
      %858 = vmatprep.subr.mxu0 0.0
      %859 = vmatpush1.xpose.msra.mxu0 0.0
      %860 = vmatprep.subr.mxu0 0.0
      %861 = vmatpush1.xpose.msra.mxu0 0.0
      %862 = vmatprep.subr.mxu0 0.0
      %863 = vmatpush1.xpose.msra.mxu0 0.0
      %864 = vmatprep.subr.mxu0 0.0
      %865 = vmatpush1.xpose.msra.mxu0 0.0
      %866 = vmatprep.subr.mxu0 0.0
      %867 = vmatpush1.xpose.msra.mxu0 0.0
      %868 = vmatprep.subr.mxu0 0.0
      %869 = vmatpush1.xpose.msra.mxu0 0.0
      %870 = vmatprep.subr.mxu0 0.0
      %871 = vmatpush1.xpose.msra.mxu0 0.0
      %872 = vmatprep.subr.mxu0 0.0
      %873 = vmatpush1.xpose.msra.mxu0 0.0
      %874 = vmatprep.subr.mxu0 0.0
      %875 = vmatpush1.xpose.msra.mxu0 0.0
      %876 = vmatprep.subr.mxu0 0.0
      %877 = vmatpush1.xpose.msra.mxu0 0.0
      %878 = vmatprep.subr.mxu0 0.0
      %879 = vmatpush1.xpose.msra.mxu0 0.0
      %880 = vmatprep.subr.mxu0 0.0
      %881 = vmatpush1.xpose.msra.mxu0 0.0
      %882 = vmatprep.subr.mxu0 0.0
      %883 = vmatpush1.xpose.msra.mxu0 0.0
      %884 = vmatprep.mubr.f32.mxu0 0.0
      %885 = vmatmul.mubr.f32.gmra.mrb[0].mxu0 %v791
      %v886 = vpop.f32.mrb[0].mxu0
      %v887 = vadd.f32 0.0, %v886
      %v888 = vpop.f32.mrb[0].mxu0
      %889 = vmatprep.mubr.f32.mxu0 0.0
      %890 = vmatmul.mubr.f32.gmra.mrb[0].mxu0 %v794
      %v891 = vpop.f32.mrb[0].mxu0
      %v892 = vadd.f32 0.0, %v891
      %v893 = vpop.f32.mrb[0].mxu0
      %894 = vmatprep.mubr.f32.mxu0 0.0
      %895 = vmatmul.mubr.f32.gmra.mrb[0].mxu0 %v797
      %v896 = vpop.f32.mrb[0].mxu0
      %v897 = vadd.f32 0.0, %v896
      %v898 = vpop.f32.mrb[0].mxu0
      %899 = vmatprep.mubr.f32.mxu0 0.0
      %900 = vmatmul.mubr.f32.gmra.mrb[0].mxu0 %v800
      %v901 = vpop.f32.mrb[0].mxu0
      %v902 = vadd.f32 0.0, %v901
      %v903 = vpop.f32.mrb[0].mxu0
      %904 = vmatprep.mubr.f32.mxu0 0.0
      %905 = vmatmul.mubr.f32.gmra.mrb[0].mxu0 %v803
      %v906 = vpop.f32.mrb[0].mxu0
      %v907 = vadd.f32 0.0, %v906
      %v908 = vpop.f32.mrb[0].mxu0
      %909 = vmatprep.mubr.f32.mxu0 0.0
      %910 = vmatmul.mubr.f32.gmra.mrb[0].mxu0 %v806
      %v911 = vpop.f32.mrb[0].mxu0
      %v912 = vadd.f32 0.0, %v911
      %v913 = vpop.f32.mrb[0].mxu0
      %914 = vmatprep.mubr.f32.mxu0 0.0
      %915 = vmatmul.mubr.f32.gmra.mrb[0].mxu0 %v809
      %v916 = vpop.f32.mrb[0].mxu0
      %v917 = vadd.f32 0.0, %v916
      %v918 = vpop.f32.mrb[0].mxu0
      %919 = vmatprep.mubr.f32.mxu0 0.0
      %920 = vmatmul.mubr.f32.gmra.mrb[0].mxu0 %v812
      %v921 = vpop.f32.mrb[0].mxu0
      %v922 = vadd.f32 0.0, %v921
      %v923 = vpop.f32.mrb[0].mxu0
      %924 = vdwg.mxu0
      %vm925 = vcmask 130048
      %v926 = vsel %vm925, %v887, -inf
      %927 = vmax.xlane.f32.xlu0 %v926
      %v928 = vpop.xlane.xlu0 %927
      %v929 = vsel %vm925, %v892, -inf
      %930 = vmax.xlane.f32.xlu0 %v929
      %v931 = vpop.xlane.xlu0 %930
      %v932 = vsel %vm925, %v897, -inf
      %933 = vmax.xlane.f32.xlu0 %v932
      %v934 = vpop.xlane.xlu0 %933
      %v935 = vsel %vm925, %v902, -inf
      %936 = vmax.xlane.f32.xlu0 %v935
      %v937 = vpop.xlane.xlu0 %936
      %v938 = vsel %vm925, %v907, -inf
      %939 = vmax.xlane.f32.xlu0 %v938
      %v940 = vpop.xlane.xlu0 %939
      %v941 = vsel %vm925, %v912, -inf
      %942 = vmax.xlane.f32.xlu0 %v941
      %v943 = vpop.xlane.xlu0 %942
      %v944 = vsel %vm925, %v917, -inf
      %945 = vmax.xlane.f32.xlu0 %v944
      %v946 = vpop.xlane.xlu0 %945
      %v947 = vsel %vm925, %v922, -inf
      %948 = vmax.xlane.f32.xlu0 %v947
      %v949 = vpop.xlane.xlu0 %948
      %v950 = vsub.f32 %v887, %v928
      %v951 = vsub.f32 %v892, %v931
      %v952 = vsub.f32 %v897, %v934
      %v953 = vsub.f32 %v902, %v937
      %v954 = vsub.f32 %v907, %v940
      %v955 = vsub.f32 %v912, %v943
      %v956 = vsub.f32 %v917, %v946
      %v957 = vsub.f32 %v922, %v949
      %v958 = vmul.f32 %v950, 1.442695
      %v959 = vpow.pop %v958
      %v960 = vmul.f32 %v951, 1.442695
      %v961 = vpow.pop %v960
      %v962 = vmul.f32 %v952, 1.442695
      %v963 = vpow.pop %v962
      %v964 = vmul.f32 %v953, 1.442695
      %v965 = vpow.pop %v964
      %v966 = vmul.f32 %v954, 1.442695
      %v967 = vpow.pop %v966
      %v968 = vmul.f32 %v955, 1.442695
      %v969 = vpow.pop %v968
      %v970 = vmul.f32 %v956, 1.442695
      %v971 = vpow.pop %v970
      %v972 = vmul.f32 %v957, 1.442695
      %v973 = vpow.pop %v972
      %v974 = vsel %vm925, %v959, 0.0
      %975 = vadd.xlane.f32.xlu0 %v974
      %v976 = vpop.xlane.xlu0 %975
      %v977 = vsel %vm925, %v961, 0.0
      %978 = vadd.xlane.f32.xlu0 %v977
      %v979 = vpop.xlane.xlu0 %978
      %v980 = vsel %vm925, %v963, 0.0
      %981 = vadd.xlane.f32.xlu0 %v980
      %v982 = vpop.xlane.xlu0 %981
      %v983 = vsel %vm925, %v965, 0.0
      %984 = vadd.xlane.f32.xlu0 %v983
      %v985 = vpop.xlane.xlu0 %984
      %v986 = vsel %vm925, %v967, 0.0
      %987 = vadd.xlane.f32.xlu0 %v986
      %v988 = vpop.xlane.xlu0 %987
      %v989 = vsel %vm925, %v969, 0.0
      %990 = vadd.xlane.f32.xlu0 %v989
      %v991 = vpop.xlane.xlu0 %990
      %v992 = vsel %vm925, %v971, 0.0
      %993 = vadd.xlane.f32.xlu0 %v992
      %v994 = vpop.xlane.xlu0 %993
      %v995 = vsel %vm925, %v973, 0.0
      %996 = vadd.xlane.f32.xlu0 %v995
      %v997 = vpop.xlane.xlu0 %996
      %v998 = vrcp.pop %v976
      %v999 = vrcp.pop %v979
      %v1000 = vrcp.pop %v982
      %v1001 = vrcp.pop %v985
      %v1002 = vrcp.pop %v988
      %v1003 = vrcp.pop %v991
      %v1004 = vrcp.pop %v994
      %v1005 = vrcp.pop %v997
      %v1006 = vmul.f32 %v959, %v998
      %v1007 = vmul.f32 %v961, %v999
      %v1008 = vmul.f32 %v963, %v1000
      %v1009 = vmul.f32 %v965, %v1001
      %v1010 = vmul.f32 %v967, %v1002
      %v1011 = vmul.f32 %v969, %v1003
      %v1012 = vmul.f32 %v971, %v1004
      %v1013 = vmul.f32 %v973, %v1005
      %v1015 = vsel %vm925, %v1006, 0
      %v1018 = vsel %vm925, %v1007, 0
      %v1021 = vsel %vm925, %v1008, 0
      %v1024 = vsel %vm925, %v1009, 0
      %v1027 = vsel %vm925, %v1010, 0
      %v1030 = vsel %vm925, %v1011, 0
      %v1033 = vsel %vm925, %v1012, 0
      %v1036 = vsel %vm925, %v1013, 0
      %1038 = vmatprep.subr.mxu0 0.0
      %1039 = vmatpush1.msra.mxu0 %v619
      %1040 = vmatprep.subr.mxu0 0.0
      %1041 = vmatpush1.msra.mxu0 %v624
      %1042 = vmatprep.subr.mxu0 0.0
      %1043 = vmatpush1.msra.mxu0 0.0
      %1044 = vmatprep.subr.mxu0 0.0
      %1045 = vmatpush1.msra.mxu0 0.0
      %1046 = vmatprep.subr.mxu0 0.0
      %1047 = vmatpush1.msra.mxu0 0.0
      %1048 = vmatprep.subr.mxu0 0.0
      %1049 = vmatpush1.msra.mxu0 0.0
      %1050 = vmatprep.subr.mxu0 0.0
      %1051 = vmatpush1.msra.mxu0 0.0
      %1052 = vmatprep.subr.mxu0 0.0
      %1053 = vmatpush1.msra.mxu0 0.0
      %1054 = vmatprep.subr.mxu0 0.0
      %1055 = vmatpush1.msra.mxu0 0.0
      %1056 = vmatprep.subr.mxu0 0.0
      %1057 = vmatpush1.msra.mxu0 0.0
      %1058 = vmatprep.subr.mxu0 0.0
      %1059 = vmatpush1.msra.mxu0 0.0
      %1060 = vmatprep.subr.mxu0 0.0
      %1061 = vmatpush1.msra.mxu0 0.0
      %1062 = vmatprep.subr.mxu0 0.0
      %1063 = vmatpush1.msra.mxu0 0.0
      %1064 = vmatprep.subr.mxu0 0.0
      %1065 = vmatpush1.msra.mxu0 0.0
      %1066 = vmatprep.subr.mxu0 0.0
      %1067 = vmatpush1.msra.mxu0 0.0
      %1068 = vmatprep.subr.mxu0 0.0
      %1069 = vmatpush1.msra.mxu0 0.0
      %1070 = vmatprep.subr.mxu0 0.0
      %1071 = vmatpush1.msra.mxu0 0.0
      %1072 = vmatprep.subr.mxu0 0.0
      %1073 = vmatpush1.msra.mxu0 0.0
      %1074 = vmatprep.subr.mxu0 0.0
      %1075 = vmatpush1.msra.mxu0 0.0
      %1076 = vmatprep.subr.mxu0 0.0
      %1077 = vmatpush1.msra.mxu0 0.0
      %1078 = vmatprep.subr.mxu0 0.0
      %1079 = vmatpush1.msra.mxu0 0.0
      %1080 = vmatprep.subr.mxu0 0.0
      %1081 = vmatpush1.msra.mxu0 0.0
      %1082 = vmatprep.subr.mxu0 0.0
      %1083 = vmatpush1.msra.mxu0 0.0
      %1084 = vmatprep.subr.mxu0 0.0
      %1085 = vmatpush1.msra.mxu0 0.0
      %1086 = vmatprep.subr.mxu0 0.0
      %1087 = vmatpush1.msra.mxu0 0.0
      %1088 = vmatprep.subr.mxu0 0.0
      %1089 = vmatpush1.msra.mxu0 0.0
      %1090 = vmatprep.subr.mxu0 0.0
      %1091 = vmatpush1.msra.mxu0 0.0
      %1092 = vmatprep.subr.mxu0 0.0
      %1093 = vmatpush1.msra.mxu0 0.0
      %1094 = vmatprep.subr.mxu0 0.0
      %1095 = vmatpush1.msra.mxu0 0.0
      %1096 = vmatprep.subr.mxu0 0.0
      %1097 = vmatpush1.msra.mxu0 0.0
      %1098 = vmatprep.subr.mxu0 0.0
      %1099 = vmatpush1.msra.mxu0 0.0
      %1100 = vmatprep.subr.mxu0 0.0
      %1101 = vmatpush1.msra.mxu0 0.0
      %1102 = vmatprep.mubr.f32.mxu0 0.0
      %1103 = vmatmul.mubr.f32.gmra.mrb[0].mxu0 %v1015
      %v1104 = vpop.f32.mrb[0].mxu0
      %v1105 = vadd.f32 0.0, %v1104
      %v1106 = vpop.f32.mrb[0].mxu0
      %1107 = vmatprep.mubr.f32.mxu0 0.0
      %1108 = vmatmul.mubr.f32.gmra.mrb[0].mxu0 %v1018
      %v1109 = vpop.f32.mrb[0].mxu0
      %v1110 = vadd.f32 0.0, %v1109
      %v1111 = vpop.f32.mrb[0].mxu0
      %1112 = vmatprep.mubr.f32.mxu0 0.0
      %1113 = vmatmul.mubr.f32.gmra.mrb[0].mxu0 %v1021
      %v1114 = vpop.f32.mrb[0].mxu0
      %v1115 = vadd.f32 0.0, %v1114
      %v1116 = vpop.f32.mrb[0].mxu0
      %1117 = vmatprep.mubr.f32.mxu0 0.0
      %1118 = vmatmul.mubr.f32.gmra.mrb[0].mxu0 %v1024
      %v1119 = vpop.f32.mrb[0].mxu0
      %v1120 = vadd.f32 0.0, %v1119
      %v1121 = vpop.f32.mrb[0].mxu0
      %1122 = vmatprep.mubr.f32.mxu0 0.0
      %1123 = vmatmul.mubr.f32.gmra.mrb[0].mxu0 %v1027
      %v1124 = vpop.f32.mrb[0].mxu0
      %v1125 = vadd.f32 0.0, %v1124
      %v1126 = vpop.f32.mrb[0].mxu0
      %1127 = vmatprep.mubr.f32.mxu0 0.0
      %1128 = vmatmul.mubr.f32.gmra.mrb[0].mxu0 %v1030
      %v1129 = vpop.f32.mrb[0].mxu0
      %v1130 = vadd.f32 0.0, %v1129
      %v1131 = vpop.f32.mrb[0].mxu0
      %1132 = vmatprep.mubr.f32.mxu0 0.0
      %1133 = vmatmul.mubr.f32.gmra.mrb[0].mxu0 %v1033
      %v1134 = vpop.f32.mrb[0].mxu0
      %v1135 = vadd.f32 0.0, %v1134
      %v1136 = vpop.f32.mrb[0].mxu0
      %1137 = vmatprep.mubr.f32.mxu0 0.0
      %1138 = vmatmul.mubr.f32.gmra.mrb[0].mxu0 %v1036
      %v1139 = vpop.f32.mrb[0].mxu0
      %v1140 = vadd.f32 0.0, %v1139
      %v1141 = vpop.f32.mrb[0].mxu0
      %1142 = vdwg.mxu0
      %v1143 = vadd.f32 %v729, %v1105
      %v1144 = vadd.f32 %v734, %v1110
      %v1145 = vadd.f32 %v739, %v1115
      %v1146 = vadd.f32 %v744, %v1120
      %v1147 = vadd.f32 %v749, %v1125
      %v1148 = vadd.f32 %v754, %v1130
      %v1149 = vadd.f32 %v759, %v1135
      %v1150 = vadd.f32 %v764, %v1140
      %v1151 = vld [vmem:[%s3] sm:$0xff]
      %v1152 = vld [vmem:[%s3 + $0x8] sm:$0xff]
      %v1153 = vld [vmem:[%s3 + $0x10] sm:$0xff]
      %v1154 = vld [vmem:[%s3 + $0x18] sm:$0xff]
      %v1155 = vld [vmem:[%s3 + $0xa0] sm:$0x1]
      %v1156 = vlaneseq
      %v1157 = vshrl.u32 %v1156, 7
      %v1158 = vsub.s32 0, %v1157
      %v1159 = vrot.slane %v1155, %v1158
      %v1161 = vsel %vm789, %v1143, 0
      %v1164 = vsel %vm789, %v1144, 0
      %v1167 = vsel %vm789, %v1145, 0
      %v1170 = vsel %vm789, %v1146, 0
      %v1173 = vsel %vm789, %v1147, 0
      %v1176 = vsel %vm789, %v1148, 0
      %v1179 = vsel %vm789, %v1149, 0
      %v1182 = vsel %vm789, %v1150, 0
      %1184 = vmatprep.subr.mxu0 0.0
      %1185 = vmatpush1.msra.mxu0 %v1151
      %1186 = vmatprep.subr.mxu0 0.0
      %1187 = vmatpush1.msra.mxu0 %v1152
      %1188 = vmatprep.subr.mxu0 0.0
      %1189 = vmatpush1.msra.mxu0 %v1153
      %1190 = vmatprep.subr.mxu0 0.0
      %1191 = vmatpush1.msra.mxu0 %v1154
      %1192 = vmatprep.subr.mxu0 0.0
      %1193 = vmatpush1.msra.mxu0 0.0
      %1194 = vmatprep.subr.mxu0 0.0
      %1195 = vmatpush1.msra.mxu0 0.0
      %1196 = vmatprep.subr.mxu0 0.0
      %1197 = vmatpush1.msra.mxu0 0.0
      %1198 = vmatprep.subr.mxu0 0.0
      %1199 = vmatpush1.msra.mxu0 0.0
      %1200 = vmatprep.subr.mxu0 0.0
      %1201 = vmatpush1.msra.mxu0 0.0
      %1202 = vmatprep.subr.mxu0 0.0
      %1203 = vmatpush1.msra.mxu0 0.0
      %1204 = vmatprep.subr.mxu0 0.0
      %1205 = vmatpush1.msra.mxu0 0.0
      %1206 = vmatprep.subr.mxu0 0.0
      %1207 = vmatpush1.msra.mxu0 0.0
      %1208 = vmatprep.subr.mxu0 0.0
      %1209 = vmatpush1.msra.mxu0 0.0
      %1210 = vmatprep.subr.mxu0 0.0
      %1211 = vmatpush1.msra.mxu0 0.0
      %1212 = vmatprep.subr.mxu0 0.0
      %1213 = vmatpush1.msra.mxu0 0.0
      %1214 = vmatprep.subr.mxu0 0.0
      %1215 = vmatpush1.msra.mxu0 0.0
      %1216 = vmatprep.subr.mxu0 0.0
      %1217 = vmatpush1.msra.mxu0 0.0
      %1218 = vmatprep.subr.mxu0 0.0
      %1219 = vmatpush1.msra.mxu0 0.0
      %1220 = vmatprep.subr.mxu0 0.0
      %1221 = vmatpush1.msra.mxu0 0.0
      %1222 = vmatprep.subr.mxu0 0.0
      %1223 = vmatpush1.msra.mxu0 0.0
      %1224 = vmatprep.subr.mxu0 0.0
      %1225 = vmatpush1.msra.mxu0 0.0
      %1226 = vmatprep.subr.mxu0 0.0
      %1227 = vmatpush1.msra.mxu0 0.0
      %1228 = vmatprep.subr.mxu0 0.0
      %1229 = vmatpush1.msra.mxu0 0.0
      %1230 = vmatprep.subr.mxu0 0.0
      %1231 = vmatpush1.msra.mxu0 0.0
      %1232 = vmatprep.subr.mxu0 0.0
      %1233 = vmatpush1.msra.mxu0 0.0
      %1234 = vmatprep.subr.mxu0 0.0
      %1235 = vmatpush1.msra.mxu0 0.0
      %1236 = vmatprep.subr.mxu0 0.0
      %1237 = vmatpush1.msra.mxu0 0.0
      %1238 = vmatprep.subr.mxu0 0.0
      %1239 = vmatpush1.msra.mxu0 0.0
      %1240 = vmatprep.subr.mxu0 0.0
      %1241 = vmatpush1.msra.mxu0 0.0
      %1242 = vmatprep.subr.mxu0 0.0
      %1243 = vmatpush1.msra.mxu0 0.0
      %1244 = vmatprep.subr.mxu0 0.0
      %1245 = vmatpush1.msra.mxu0 0.0
      %1246 = vmatprep.subr.mxu0 0.0
      %1247 = vmatpush1.msra.mxu0 0.0
      %1248 = vmatprep.mubr.f32.mxu0 0.0
      %1249 = vmatmul.mubr.f32.gmra.mrb[0].mxu0 %v1161
      %v1250 = vpop.f32.mrb[0].mxu0
      %v1251 = vadd.f32 %v1159, %v1250
      %v1252 = vpop.f32.mrb[0].mxu0
      %1253 = vmatprep.mubr.f32.mxu0 0.0
      %1254 = vmatmul.mubr.f32.gmra.mrb[0].mxu0 %v1164
      %v1255 = vpop.f32.mrb[0].mxu0
      %v1256 = vadd.f32 %v1159, %v1255
      %v1257 = vpop.f32.mrb[0].mxu0
      %1258 = vmatprep.mubr.f32.mxu0 0.0
      %1259 = vmatmul.mubr.f32.gmra.mrb[0].mxu0 %v1167
      %v1260 = vpop.f32.mrb[0].mxu0
      %v1261 = vadd.f32 %v1159, %v1260
      %v1262 = vpop.f32.mrb[0].mxu0
      %1263 = vmatprep.mubr.f32.mxu0 0.0
      %1264 = vmatmul.mubr.f32.gmra.mrb[0].mxu0 %v1170
      %v1265 = vpop.f32.mrb[0].mxu0
      %v1266 = vadd.f32 %v1159, %v1265
      %v1267 = vpop.f32.mrb[0].mxu0
      %1268 = vmatprep.mubr.f32.mxu0 0.0
      %1269 = vmatmul.mubr.f32.gmra.mrb[0].mxu0 %v1173
      %v1270 = vpop.f32.mrb[0].mxu0
      %v1271 = vadd.f32 %v1159, %v1270
      %v1272 = vpop.f32.mrb[0].mxu0
      %1273 = vmatprep.mubr.f32.mxu0 0.0
      %1274 = vmatmul.mubr.f32.gmra.mrb[0].mxu0 %v1176
      %v1275 = vpop.f32.mrb[0].mxu0
      %v1276 = vadd.f32 %v1159, %v1275
      %v1277 = vpop.f32.mrb[0].mxu0
      %1278 = vmatprep.mubr.f32.mxu0 0.0
      %1279 = vmatmul.mubr.f32.gmra.mrb[0].mxu0 %v1179
      %v1280 = vpop.f32.mrb[0].mxu0
      %v1281 = vadd.f32 %v1159, %v1280
      %v1282 = vpop.f32.mrb[0].mxu0
      %1283 = vmatprep.mubr.f32.mxu0 0.0
      %1284 = vmatmul.mubr.f32.gmra.mrb[0].mxu0 %v1182
      %v1285 = vpop.f32.mrb[0].mxu0
      %v1286 = vadd.f32 %v1159, %v1285
      %v1287 = vpop.f32.mrb[0].mxu0
      %1288 = vdwg.mxu0
      %1289 = vst [vmem:[%s259] sm:$0xff] %v1251
      %1290 = vst [vmem:[%s259 + $0x8] sm:$0xff] %v1256
      %1291 = vst [vmem:[%s259 + $0x10] sm:$0xff] %v1261
      %1292 = vst [vmem:[%s259 + $0x18] sm:$0xff] %v1266
      %1293 = vst [vmem:[%s259 + $0x20] sm:$0xff] %v1271
      %1294 = vst [vmem:[%s259 + $0x28] sm:$0xff] %v1276
      %1295 = vst [vmem:[%s259 + $0x30] sm:$0xff] %v1281
      %1296 = vst [vmem:[%s259 + $0x38] sm:$0xff] %v1286
      %v1297 = vmax.f32 %v1251, 0.0
      %v1298 = vmax.f32 %v1256, 0.0
      %v1299 = vmax.f32 %v1261, 0.0
      %v1300 = vmax.f32 %v1266, 0.0
      %v1301 = vmax.f32 %v1271, 0.0
      %v1302 = vmax.f32 %v1276, 0.0
      %v1303 = vmax.f32 %v1281, 0.0
      %v1304 = vmax.f32 %v1286, 0.0
      %v1305 = vld [vmem:[%s3 + $0x20] sm:$0xff]
      %v1306 = vld [vmem:[%s3 + $0x28] sm:$0xff]
      %v1307 = vld [vmem:[%s3 + $0x30] sm:$0xff]
      %v1308 = vld [vmem:[%s3 + $0x38] sm:$0xff]
      %v1309 = vld [vmem:[%s3 + $0x40] sm:$0xff]
      %v1310 = vld [vmem:[%s3 + $0x48] sm:$0xff]
      %v1311 = vld [vmem:[%s3 + $0x50] sm:$0xff]
      %v1312 = vld [vmem:[%s3 + $0x58] sm:$0xff]
      %v1313 = vld [vmem:[%s3 + $0x60] sm:$0xff]
      %v1314 = vld [vmem:[%s3 + $0x68] sm:$0xff]
      %v1315 = vld [vmem:[%s3 + $0x70] sm:$0xff]
      %v1316 = vld [vmem:[%s3 + $0x78] sm:$0xff]
      %v1317 = vld [vmem:[%s3 + $0x80] sm:$0xff]
      %v1318 = vld [vmem:[%s3 + $0x88] sm:$0xff]
      %v1319 = vld [vmem:[%s3 + $0x90] sm:$0xff]
      %v1320 = vld [vmem:[%s3 + $0x98] sm:$0xff]
      %v1321 = vld [vmem:[%s3 + $0xa8] sm:$0x1]
      %v1322 = vlaneseq
      %v1323 = vshrl.u32 %v1322, 7
      %v1324 = vsub.s32 0, %v1323
      %v1325 = vrot.slane %v1321, %v1324
      %1326 = vmatprep.subr.mxu0 0.0
      %1327 = vmatpush1.msra.mxu0 %v1305
      %1328 = vmatprep.subr.mxu0 0.0
      %1329 = vmatpush1.msra.mxu0 %v1306
      %1330 = vmatprep.subr.mxu0 0.0
      %1331 = vmatpush1.msra.mxu0 %v1307
      %1332 = vmatprep.subr.mxu0 0.0
      %1333 = vmatpush1.msra.mxu0 %v1308
      %1334 = vmatprep.subr.mxu0 0.0
      %1335 = vmatpush1.msra.mxu0 %v1309
      %1336 = vmatprep.subr.mxu0 0.0
      %1337 = vmatpush1.msra.mxu0 %v1310
      %1338 = vmatprep.subr.mxu0 0.0
      %1339 = vmatpush1.msra.mxu0 %v1311
      %1340 = vmatprep.subr.mxu0 0.0
      %1341 = vmatpush1.msra.mxu0 %v1312
      %1342 = vmatprep.subr.mxu0 0.0
      %1343 = vmatpush1.msra.mxu0 %v1313
      %1344 = vmatprep.subr.mxu0 0.0
      %1345 = vmatpush1.msra.mxu0 %v1314
      %1346 = vmatprep.subr.mxu0 0.0
      %1347 = vmatpush1.msra.mxu0 %v1315
      %1348 = vmatprep.subr.mxu0 0.0
      %1349 = vmatpush1.msra.mxu0 %v1316
      %1350 = vmatprep.subr.mxu0 0.0
      %1351 = vmatpush1.msra.mxu0 %v1317
      %1352 = vmatprep.subr.mxu0 0.0
      %1353 = vmatpush1.msra.mxu0 %v1318
      %1354 = vmatprep.subr.mxu0 0.0
      %1355 = vmatpush1.msra.mxu0 %v1319
      %1356 = vmatprep.subr.mxu0 0.0
      %1357 = vmatpush1.msra.mxu0 %v1320
      %1358 = vmatprep.subr.mxu0 0.0
      %1359 = vmatpush1.msra.mxu0 0.0
      %1360 = vmatprep.subr.mxu0 0.0
      %1361 = vmatpush1.msra.mxu0 0.0
      %1362 = vmatprep.subr.mxu0 0.0
      %1363 = vmatpush1.msra.mxu0 0.0
      %1364 = vmatprep.subr.mxu0 0.0
      %1365 = vmatpush1.msra.mxu0 0.0
      %1366 = vmatprep.subr.mxu0 0.0
      %1367 = vmatpush1.msra.mxu0 0.0
      %1368 = vmatprep.subr.mxu0 0.0
      %1369 = vmatpush1.msra.mxu0 0.0
      %1370 = vmatprep.subr.mxu0 0.0
      %1371 = vmatpush1.msra.mxu0 0.0
      %1372 = vmatprep.subr.mxu0 0.0
      %1373 = vmatpush1.msra.mxu0 0.0
      %1374 = vmatprep.subr.mxu0 0.0
      %1375 = vmatpush1.msra.mxu0 0.0
      %1376 = vmatprep.subr.mxu0 0.0
      %1377 = vmatpush1.msra.mxu0 0.0
      %1378 = vmatprep.subr.mxu0 0.0
      %1379 = vmatpush1.msra.mxu0 0.0
      %1380 = vmatprep.subr.mxu0 0.0
      %1381 = vmatpush1.msra.mxu0 0.0
      %1382 = vmatprep.subr.mxu0 0.0
      %1383 = vmatpush1.msra.mxu0 0.0
      %1384 = vmatprep.subr.mxu0 0.0
      %1385 = vmatpush1.msra.mxu0 0.0
      %1386 = vmatprep.subr.mxu0 0.0
      %1387 = vmatpush1.msra.mxu0 0.0
      %1388 = vmatprep.subr.mxu0 0.0
      %1389 = vmatpush1.msra.mxu0 0.0
      %1390 = vmatprep.mubr.f32.mxu0 0.0
      %1391 = vmatmul.mubr.f32.gmra.mrb[0].mxu0 %v1297
      %v1392 = vpop.f32.mrb[0].mxu0
      %v1393 = vadd.f32 %v1325, %v1392
      %v1394 = vpop.f32.mrb[0].mxu0
      %1395 = vmatprep.mubr.f32.mxu0 0.0
      %1396 = vmatmul.mubr.f32.gmra.mrb[0].mxu0 %v1298
      %v1397 = vpop.f32.mrb[0].mxu0
      %v1398 = vadd.f32 %v1325, %v1397
      %v1399 = vpop.f32.mrb[0].mxu0
      %1400 = vmatprep.mubr.f32.mxu0 0.0
      %1401 = vmatmul.mubr.f32.gmra.mrb[0].mxu0 %v1299
      %v1402 = vpop.f32.mrb[0].mxu0
      %v1403 = vadd.f32 %v1325, %v1402
      %v1404 = vpop.f32.mrb[0].mxu0
      %1405 = vmatprep.mubr.f32.mxu0 0.0
      %1406 = vmatmul.mubr.f32.gmra.mrb[0].mxu0 %v1300
      %v1407 = vpop.f32.mrb[0].mxu0
      %v1408 = vadd.f32 %v1325, %v1407
      %v1409 = vpop.f32.mrb[0].mxu0
      %1410 = vmatprep.mubr.f32.mxu0 0.0
      %1411 = vmatmul.mubr.f32.gmra.mrb[0].mxu0 %v1301
      %v1412 = vpop.f32.mrb[0].mxu0
      %v1413 = vadd.f32 %v1325, %v1412
      %v1414 = vpop.f32.mrb[0].mxu0
      %1415 = vmatprep.mubr.f32.mxu0 0.0
      %1416 = vmatmul.mubr.f32.gmra.mrb[0].mxu0 %v1302
      %v1417 = vpop.f32.mrb[0].mxu0
      %v1418 = vadd.f32 %v1325, %v1417
      %v1419 = vpop.f32.mrb[0].mxu0
      %1420 = vmatprep.mubr.f32.mxu0 0.0
      %1421 = vmatmul.mubr.f32.gmra.mrb[0].mxu0 %v1303
      %v1422 = vpop.f32.mrb[0].mxu0
      %v1423 = vadd.f32 %v1325, %v1422
      %v1424 = vpop.f32.mrb[0].mxu0
      %1425 = vmatprep.mubr.f32.mxu0 0.0
      %1426 = vmatmul.mubr.f32.gmra.mrb[0].mxu0 %v1304
      %v1427 = vpop.f32.mrb[0].mxu0
      %v1428 = vadd.f32 %v1325, %v1427
      %v1429 = vpop.f32.mrb[0].mxu0
      %1430 = vdwg.mxu0
      %v1431 = vxor.u32 %v1393, 2147483648
      %v1432 = vxor.u32 %v1398, 2147483648
      %v1433 = vxor.u32 %v1403, 2147483648
      %v1434 = vxor.u32 %v1408, 2147483648
      %v1435 = vxor.u32 %v1413, 2147483648
      %v1436 = vxor.u32 %v1418, 2147483648
      %v1437 = vxor.u32 %v1423, 2147483648
      %v1438 = vxor.u32 %v1428, 2147483648
      %v1439 = vmul.f32 %v1431, 1.442695
      %v1440 = vpow.pop %v1439
      %v1441 = vmul.f32 %v1432, 1.442695
      %v1442 = vpow.pop %v1441
      %v1443 = vmul.f32 %v1433, 1.442695
      %v1444 = vpow.pop %v1443
      %v1445 = vmul.f32 %v1434, 1.442695
      %v1446 = vpow.pop %v1445
      %v1447 = vmul.f32 %v1435, 1.442695
      %v1448 = vpow.pop %v1447
      %v1449 = vmul.f32 %v1436, 1.442695
      %v1450 = vpow.pop %v1449
      %v1451 = vmul.f32 %v1437, 1.442695
      %v1452 = vpow.pop %v1451
      %v1453 = vmul.f32 %v1438, 1.442695
      %v1454 = vpow.pop %v1453
      %v1455 = vadd.f32 %v1440, 1.0
      %v1456 = vadd.f32 %v1442, 1.0
      %v1457 = vadd.f32 %v1444, 1.0
      %v1458 = vadd.f32 %v1446, 1.0
      %v1459 = vadd.f32 %v1448, 1.0
      %v1460 = vadd.f32 %v1450, 1.0
      %v1461 = vadd.f32 %v1452, 1.0
      %v1462 = vadd.f32 %v1454, 1.0
      %v1463 = vrcp.pop %v1455
      %v1464 = vmul.f32 1.0, %v1463
      %v1465 = vrcp.pop %v1456
      %v1466 = vmul.f32 1.0, %v1465
      %v1467 = vrcp.pop %v1457
      %v1468 = vmul.f32 1.0, %v1467
      %v1469 = vrcp.pop %v1458
      %v1470 = vmul.f32 1.0, %v1469
      %v1471 = vrcp.pop %v1459
      %v1472 = vmul.f32 1.0, %v1471
      %v1473 = vrcp.pop %v1460
      %v1474 = vmul.f32 1.0, %v1473
      %v1475 = vrcp.pop %v1461
      %v1476 = vmul.f32 1.0, %v1475
      %v1477 = vrcp.pop %v1462
      %v1478 = vmul.f32 1.0, %v1477
      %1479 = vst [vmem:[%s265] sm:$0xff] %v1464
      %1480 = vst [vmem:[%s265 + $0x8] sm:$0xff] %v1466
      %1481 = vst [vmem:[%s265 + $0x10] sm:$0xff] %v1468
      %1482 = vst [vmem:[%s265 + $0x18] sm:$0xff] %v1470
      %1483 = vst [vmem:[%s265 + $0x20] sm:$0xff] %v1472
      %1484 = vst [vmem:[%s265 + $0x28] sm:$0xff] %v1474
      %1485 = vst [vmem:[%s265 + $0x30] sm:$0xff] %v1476
      %1486 = vst [vmem:[%s265 + $0x38] sm:$0xff] %v1478
      %s1487 = smul.u32 8, %s17
      %p1488 = scmp.lt.s32.totalorder %s1487, 15
      %s1489 = scalar_select %p1488, %s1487, 15
      %s1490 = smul.addr %s1489, 8
      %s1491 = scalar_lea.vmem %s4, %s1490
      %s1492 = smul.u32 8, %s17
      %p1493 = scmp.lt.s32.totalorder %s1492, 15
      %s1494 = scalar_select %p1493, %s1492, 15
      %s1495 = smul.addr %s1494, 8
      %s1496 = scalar_lea.vmem %s5, %s1495
      // Predicated region
      $region37: #{transt_variant_forward.1} parent=35 // pred_check
        %p1497 = pneg %p129
      $region38: #{transt_variant_forward.1} parent=35 // pred_check_branch
        %1499 = sbr.rel (%p1497) target = $region40
      $region39: #{transt_variant_forward.1} parent=35 // pred_region
        %s1500 = smul.u32 8, %s17
      $region40: #{transt_variant_forward.1} parent=35 // pred_fallthru
        _
      // Predicated region
      $region41: #{transt_variant_forward.1} parent=35 // pred_check
        %p1501 = pneg %p155
      $region42: #{transt_variant_forward.1} parent=35 // pred_check_branch
        %1503 = sbr.rel (%p1501) target = $region44
      $region43: #{transt_variant_forward.1} parent=35 // pred_region
        %s1504 = smul.u32 8, %s17
      $region44: #{transt_variant_forward.1} parent=35 // pred_fallthru
        _
    $region36: #{transt_variant_forward.1} parent=5 // pred_fallthru
      _
    %p1505 = scmp.le.s32.totalorder 2, %s12
    // Predicated region
    $region45: #{transt_variant_forward.1} parent=5 // pred_check
      %p1506 = pneg %p1505
    $region46: #{transt_variant_forward.1} parent=5 // pred_check_branch
      %1508 = sbr.rel (%p1506) target = $region48
    $region47: #{transt_variant_forward.1} parent=5 // pred_region
      %s1509 = ssub.s32 %s12, 2
      // Predicated region
      $region49: #{transt_variant_forward.1} parent=47 // pred_check
        %p1510 = pneg %p135
      $region50: #{transt_variant_forward.1} parent=47 // pred_check_branch
        %1512 = sbr.rel (%p1510) target = $region52
      $region51: #{transt_variant_forward.1} parent=47 // pred_region
        %s1513 = smul.u32 8, %s18
        %p1514 = scmp.lt.s32.totalorder %s1513, 15
        %s1515 = scalar_select %p1514, %s1513, 15
        %s1516 = smul.addr %s1515, 8
        %s1517 = scalar_lea.vmem %s4, %s1516
      $region52: #{transt_variant_forward.1} parent=47 // pred_fallthru
        _
      // Predicated region
      $region53: #{transt_variant_forward.1} parent=47 // pred_check
        %p1518 = pneg %p161
      $region54: #{transt_variant_forward.1} parent=47 // pred_check_branch
        %1520 = sbr.rel (%p1518) target = $region56
      $region55: #{transt_variant_forward.1} parent=47 // pred_region
        %s1521 = smul.u32 8, %s18
        %p1522 = scmp.lt.s32.totalorder %s1521, 15
        %s1523 = scalar_select %p1522, %s1521, 15
        %s1524 = smul.addr %s1523, 8
        %s1525 = scalar_lea.vmem %s5, %s1524
      $region56: #{transt_variant_forward.1} parent=47 // pred_fallthru
        _
    $region48: #{transt_variant_forward.1} parent=5 // pred_fallthru
      _
  $region6: #{transt_variant_forward.1} parent=0 // loop_footer
    %s16 = sadd.s32 1, %s12
  $region7: #{transt_variant_forward.1} parent=0 // loop_footer_branch
    %11 = sbr.rel target = $region3
  $region8: #{transt_variant_forward.1} parent=0 // loop_exit
    _

</llo_original>
